<compile_context>
chip_gen: v7x
topology: tpu7x:2x2x1
jax: 0.10.0
libtpu: 0.0.40
codegen_flags: <defaults>
</compile_context>

<pallas_src>
import functools

import jax
import jax.numpy as jnp
from jax.experimental import pallas as pl
from jax.experimental.pallas import tpu as pltpu

_LANE = 128      # vreg lane width
_SUBLANE = 8     # vreg sublane count (f32)


def _round_up(n, m):
    return ((n + m - 1) // m) * m


def mlp_kernel(x_ref, w1_ref, b1_ref, w2_ref, b2_ref, w3_ref, b3_ref, o_ref):
    """Fused 3-layer MLP forward for one batch tile (fully VMEM-resident)."""
    x = x_ref[...]
    h1 = jnp.dot(x, w1_ref[...], preferred_element_type=jnp.float32) + b1_ref[...]
    h1 = jnp.maximum(h1, 0.0)                                   # ReLU (VPU)
    h2 = jnp.dot(h1, w2_ref[...], preferred_element_type=jnp.float32) + b2_ref[...]
    h2 = jnp.maximum(h2, 0.0)                                   # ReLU (VPU)
    z = jnp.dot(h2, w3_ref[...], preferred_element_type=jnp.float32) + b3_ref[...]
    o_ref[...] = jax.nn.sigmoid(z)                              # exp on EUP


def mlp_forward(x, params, *, batch_tile=512):
    """x: (B, input_dim) f32.  params: dict of transposed weights / biases."""
    B, in_dim = x.shape
    w1, b1 = params["w1"], params["b1"]
    w2, b2 = params["w2"], params["b2"]
    w3, b3 = params["w3"], params["b3"]
    out_dim = w3.shape[1]                       # == 1

    # ---- lane-pad feature dims to multiples of 128 ------------------------
    in_p = _round_up(in_dim, _LANE)
    h1_p = _round_up(w1.shape[1], _LANE)
    h2_p = _round_up(w2.shape[1], _LANE)
    out_p = _round_up(out_dim, _LANE)           # 1 -> 128: lane-dense output

    def pad2(a, rows, cols):
        return jnp.pad(a, ((0, rows - a.shape[0]), (0, cols - a.shape[1])))

    # ---- batch tile: multiple of 8, big, and >= 2 grid steps when possible -
    batch_tile = _round_up(batch_tile, _SUBLANE)
    b_up = _round_up(B, _SUBLANE)
    tb = min(batch_tile, b_up)
    if B > _SUBLANE and b_up // tb < 2:
        # ensure at least 2 "parallel" grid steps so v7x's 2 TCs both get work
        tb = _round_up(pl.cdiv(B, 2), _SUBLANE)
    grid_b = pl.cdiv(B, tb)                     # no divisibility assert: pad
    b_pad = grid_b * tb

    x_p = pad2(x, b_pad, in_p)
    w1_p, b1_p = pad2(w1, in_p, h1_p), pad2(b1, 1, h1_p)
    w2_p, b2_p = pad2(w2, h1_p, h2_p), pad2(b2, 1, h2_p)
    w3_p, b3_p = pad2(w3, h2_p, out_p), pad2(b3, 1, out_p)

    batch_map = lambda i: (i, 0)                # batch-tiled arrays
    full_map = lambda i: (0, 0)                 # weights/biases: VMEM-resident
    # NOTE: weight blocks never change across grid steps; pl.Buffered(1) on
    # their specs would free one buffer each if the model is ever scaled up.

    out = pl.pallas_call(
        mlp_kernel,
        out_shape=jax.ShapeDtypeStruct((b_pad, out_p), jnp.float32),
        grid_spec=pltpu.PrefetchScalarGridSpec(
            num_scalar_prefetch=0,
            grid=(grid_b,),
            in_specs=[
                pl.BlockSpec((tb, in_p), batch_map),
                pl.BlockSpec((in_p, h1_p), full_map),
                pl.BlockSpec((1, h1_p), full_map),
                pl.BlockSpec((h1_p, h2_p), full_map),
                pl.BlockSpec((1, h2_p), full_map),
                pl.BlockSpec((h2_p, out_p), full_map),
                pl.BlockSpec((1, out_p), full_map),
            ],
            out_specs=pl.BlockSpec((tb, out_p), batch_map),
        ),
        compiler_params=pltpu.CompilerParams(
            dimension_semantics=("parallel",)),
    )(x_p, w1_p, b1_p, w2_p, b2_p, w3_p, b3_p)

    # Slice off padded batch rows and padded output lanes.
    return out[:B, :out_dim]


def init_params(key, input_dim, layers):
    """Deterministic init mimicking nn.Linear's uniform(-1/sqrt(fan_in), ...).
    Weights stored transposed: (in_features, out_features)."""
    assert len(layers) == 2, "kernel is specialized for 2 hidden layers"
    dims = [input_dim] + list(layers) + [1]
    params = {}
    for idx, (fan_in, fan_out) in enumerate(zip(dims[:-1], dims[1:])):
        key, kw, kb = jax.random.split(key, 3)
        bound = 1.0 / jnp.sqrt(fan_in)
        params[f"w{idx + 1}"] = jax.random.uniform(
            kw, (fan_in, fan_out), jnp.float32, -bound, bound)
        params[f"b{idx + 1}"] = jax.random.uniform(
            kb, (1, fan_out), jnp.float32, -bound, bound)
    return params


def reference_forward(x, p):
    h1 = jnp.maximum(x @ p["w1"] + p["b1"], 0.0)
    h2 = jnp.maximum(h1 @ p["w2"] + p["b2"], 0.0)
    return jax.nn.sigmoid(h2 @ p["w3"] + p["b3"])


if __name__ == "__main__":
    key = jax.random.PRNGKey(0)
    batch, input_dim, layers = 1024, 16, [32, 32]

    kx, kp = jax.random.split(key)
    x = jax.random.normal(kx, (batch, input_dim), jnp.float32)
    params = init_params(kp, input_dim, layers)

    out = jax.block_until_ready(mlp_forward(x, params))

    ref = reference_forward(x, params)
    assert out.shape == (batch, 1)
    assert jnp.allclose(out, ref, atol=1e-5, rtol=1e-5)

    print("KERNEL_OK")
</pallas_src>

<mosaic_0001>
module attributes {stable_mosaic.version = 11 : i64} {
  func.func @mlp_kernel(%arg0: i32, %arg1: memref<512x128xf32, #tpu.memory_space<vmem>>, %arg2: memref<128x128xf32, #tpu.memory_space<vmem>>, %arg3: memref<1x128xf32, #tpu.memory_space<vmem>>, %arg4: memref<128x128xf32, #tpu.memory_space<vmem>>, %arg5: memref<1x128xf32, #tpu.memory_space<vmem>>, %arg6: memref<128x128xf32, #tpu.memory_space<vmem>>, %arg7: memref<1x128xf32, #tpu.memory_space<vmem>>, %arg8: memref<512x128xf32, #tpu.memory_space<vmem>>) attributes {dimension_semantics = [#tpu.dimension_semantics<parallel>], iteration_bounds = array<i64: 2>, scalar_prefetch = 0 : i64, scratch_operands = 0 : i64, tpu.core_type = #tpu.core_type<tc>, window_params = [{transform_indices = @transform_0, window_bounds = array<i64: 512, 128>}, {pipeline_mode = #tpu.pipeline_mode<synchronous>, transform_indices = @transform_1, window_bounds = array<i64: 128, 128>}, {pipeline_mode = #tpu.pipeline_mode<synchronous>, transform_indices = @transform_2, window_bounds = array<i64: 1, 128>}, {pipeline_mode = #tpu.pipeline_mode<synchronous>, transform_indices = @transform_3, window_bounds = array<i64: 128, 128>}, {pipeline_mode = #tpu.pipeline_mode<synchronous>, transform_indices = @transform_4, window_bounds = array<i64: 1, 128>}, {pipeline_mode = #tpu.pipeline_mode<synchronous>, transform_indices = @transform_5, window_bounds = array<i64: 128, 128>}, {pipeline_mode = #tpu.pipeline_mode<synchronous>, transform_indices = @transform_6, window_bounds = array<i64: 1, 128>}, {transform_indices = @transform_7, window_bounds = array<i64: 512, 128>}]} {
    %c0 = arith.constant 0 : index
    %c0_0 = arith.constant 0 : index
    %0 = vector.load %arg1[%c0, %c0_0] : memref<512x128xf32, #tpu.memory_space<vmem>>, vector<512x128xf32>
    %c0_1 = arith.constant 0 : index
    %c0_2 = arith.constant 0 : index
    %1 = vector.load %arg2[%c0_1, %c0_2] : memref<128x128xf32, #tpu.memory_space<vmem>>, vector<128x128xf32>
    %cst = arith.constant dense<0.000000e+00> : vector<512x128xf32>
    %2 = tpu.matmul %0, %1, %cst {dimension_numbers = #tpu.dot_dimension_numbers<[1], [0], [0], [1], [0, 0, 1, 1], [], []>} : vector<512x128xf32>, vector<128x128xf32>, vector<512x128xf32> -> vector<512x128xf32>
    %c0_3 = arith.constant 0 : index
    %c0_4 = arith.constant 0 : index
    %3 = vector.load %arg3[%c0_3, %c0_4] : memref<1x128xf32, #tpu.memory_space<vmem>>, vector<1x128xf32>
    %4 = vector.broadcast %3 : vector<1x128xf32> to vector<512x128xf32>
    %5 = arith.addf %2, %4 : vector<512x128xf32>
    %cst_5 = arith.constant 0.000000e+00 : f32
    %6 = vector.broadcast %cst_5 : f32 to vector<512x128xf32>
    %7 = arith.maximumf %5, %6 : vector<512x128xf32>
    %c0_6 = arith.constant 0 : index
    %c0_7 = arith.constant 0 : index
    %8 = vector.load %arg4[%c0_6, %c0_7] : memref<128x128xf32, #tpu.memory_space<vmem>>, vector<128x128xf32>
    %cst_8 = arith.constant dense<0.000000e+00> : vector<512x128xf32>
    %9 = tpu.matmul %7, %8, %cst_8 {dimension_numbers = #tpu.dot_dimension_numbers<[1], [0], [0], [1], [0, 0, 1, 1], [], []>} : vector<512x128xf32>, vector<128x128xf32>, vector<512x128xf32> -> vector<512x128xf32>
    %c0_9 = arith.constant 0 : index
    %c0_10 = arith.constant 0 : index
    %10 = vector.load %arg5[%c0_9, %c0_10] : memref<1x128xf32, #tpu.memory_space<vmem>>, vector<1x128xf32>
    %11 = vector.broadcast %10 : vector<1x128xf32> to vector<512x128xf32>
    %12 = arith.addf %9, %11 : vector<512x128xf32>
    %cst_11 = arith.constant 0.000000e+00 : f32
    %13 = vector.broadcast %cst_11 : f32 to vector<512x128xf32>
    %14 = arith.maximumf %12, %13 : vector<512x128xf32>
    %c0_12 = arith.constant 0 : index
    %c0_13 = arith.constant 0 : index
    %15 = vector.load %arg6[%c0_12, %c0_13] : memref<128x128xf32, #tpu.memory_space<vmem>>, vector<128x128xf32>
    %cst_14 = arith.constant dense<0.000000e+00> : vector<512x128xf32>
    %16 = tpu.matmul %14, %15, %cst_14 {dimension_numbers = #tpu.dot_dimension_numbers<[1], [0], [0], [1], [0, 0, 1, 1], [], []>} : vector<512x128xf32>, vector<128x128xf32>, vector<512x128xf32> -> vector<512x128xf32>
    %c0_15 = arith.constant 0 : index
    %c0_16 = arith.constant 0 : index
    %17 = vector.load %arg7[%c0_15, %c0_16] : memref<1x128xf32, #tpu.memory_space<vmem>>, vector<1x128xf32>
    %18 = vector.broadcast %17 : vector<1x128xf32> to vector<512x128xf32>
    %19 = arith.addf %16, %18 : vector<512x128xf32>
    %20 = arith.negf %19 : vector<512x128xf32>
    %21 = math.exp %20 : vector<512x128xf32>
    %cst_17 = arith.constant 1.000000e+00 : f32
    %22 = vector.broadcast %cst_17 : f32 to vector<512x128xf32>
    %23 = arith.addf %22, %21 : vector<512x128xf32>
    %24 = arith.divf %22, %23 : vector<512x128xf32>
    %c0_18 = arith.constant 0 : index
    %c0_19 = arith.constant 0 : index
    %25 = vector.load %arg8[%c0_18, %c0_19] : memref<512x128xf32, #tpu.memory_space<vmem>>, vector<512x128xf32>
    tpu.vector_store %arg8[%c0_18, %c0_19], %24 {strides = array<i32>} : memref<512x128xf32, #tpu.memory_space<vmem>>, vector<512x128xf32>,
    return
  }
  func.func @transform_0(%arg0: i32) -> (i32, i32) {
    %c0_i32 = arith.constant 0 : i32
    %c0_i32_0 = arith.constant 0 : i32
    return %arg0, %c0_i32 : i32, i32
  }
  func.func @transform_1(%arg0: i32) -> (i32, i32) {
    %c0_i32 = arith.constant 0 : i32
    %c0_i32_0 = arith.constant 0 : i32
    %c0_i32_1 = arith.constant 0 : i32
    return %c0_i32, %c0_i32_0 : i32, i32
  }
  func.func @transform_2(%arg0: i32) -> (i32, i32) {
    %c0_i32 = arith.constant 0 : i32
    %c0_i32_0 = arith.constant 0 : i32
    %c0_i32_1 = arith.constant 0 : i32
    return %c0_i32, %c0_i32_0 : i32, i32
  }
  func.func @transform_3(%arg0: i32) -> (i32, i32) {
    %c0_i32 = arith.constant 0 : i32
    %c0_i32_0 = arith.constant 0 : i32
    %c0_i32_1 = arith.constant 0 : i32
    return %c0_i32, %c0_i32_0 : i32, i32
  }
  func.func @transform_4(%arg0: i32) -> (i32, i32) {
    %c0_i32 = arith.constant 0 : i32
    %c0_i32_0 = arith.constant 0 : i32
    %c0_i32_1 = arith.constant 0 : i32
    return %c0_i32, %c0_i32_0 : i32, i32
  }
  func.func @transform_5(%arg0: i32) -> (i32, i32) {
    %c0_i32 = arith.constant 0 : i32
    %c0_i32_0 = arith.constant 0 : i32
    %c0_i32_1 = arith.constant 0 : i32
    return %c0_i32, %c0_i32_0 : i32, i32
  }
  func.func @transform_6(%arg0: i32) -> (i32, i32) {
    %c0_i32 = arith.constant 0 : i32
    %c0_i32_0 = arith.constant 0 : i32
    %c0_i32_1 = arith.constant 0 : i32
    return %c0_i32, %c0_i32_0 : i32, i32
  }
  func.func @transform_7(%arg0: i32) -> (i32, i32) {
    %c0_i32 = arith.constant 0 : i32
    %c0_i32_0 = arith.constant 0 : i32
    return %arg0, %c0_i32 : i32, i32
  }
}

</mosaic_0001>

<llo_original>
// kernel: tpu_custom_call.1
$region0: #{tpu_custom_call.1}
  #allocation0 [shape = 'u32[]', space=smem, size = 0x4, offset = 0x4, fixed_abs, tag = 'smem constant byte address 0x4 - core index']
  #allocation1 [shape = 'u32[144,128]{1,0:T(1,128)}', space=vmem, size = 0x12000, scoped, tag = 'internal scratch']
  %s0 = inlined_call_operand.hbm [shape: f32[1024,128], index: 0, kind: input, shape index: {}]
  %s1 = inlined_call_operand.hbm [shape: f32[128,128], index: 1, kind: input, shape index: {}]
  %s2 = inlined_call_operand.vmem [shape: f32[1,128], index: 2, kind: input, shape index: {}]
  %s3 = inlined_call_operand.hbm [shape: f32[128,128], index: 3, kind: input, shape index: {}]
  %s4 = inlined_call_operand.vmem [shape: f32[1,128], index: 4, kind: input, shape index: {}]
  %s5 = inlined_call_operand.hbm [shape: f32[128,128], index: 5, kind: input, shape index: {}]
  %s6 = inlined_call_operand.vmem [shape: f32[1,128], index: 6, kind: input, shape index: {}]
  %s7 = inlined_call_operand.hbm [shape: f32[1024,128], index: 7, kind: output, shape index: {}]
  %s8 = sld [smem:[#allocation0]]
  $region77: #{tpu_custom_call.1} parent=0
    _
  %s10 = ssub.s32 1, %s8
  %s11 = scalar_select 0, %s10, %s8
  $region1: #{tpu_custom_call.1} parent=0
    #allocation2 [shape = 'u8[524288]{0}', space=vmem, size = 0x80000, scoped, tag = 'input window, operand 0']
    #allocation3 [shape = 's32[2]{0}', space=sflag, size = 0x8, scoped, tag = 'scoped memory for tpu_custom_call.1']
    #allocation4 [shape = 's32[2]{0}', space=sflag, size = 0x8, scoped, tag = 'scoped memory for tpu_custom_call.1']
    #allocation5 [shape = 'u8[65536]{0}', space=vmem, size = 0x10000, scoped, tag = 'input window, operand 1, single buffered']
    #allocation6 [shape = 's32[1]{0}', space=sflag, size = 0x4, scoped, tag = 'scoped memory for tpu_custom_call.1']
    #allocation7 [shape = 'u8[65536]{0}', space=vmem, size = 0x10000, scoped, tag = 'input window, operand 3, single buffered']
    #allocation8 [shape = 'u8[65536]{0}', space=vmem, size = 0x10000, scoped, tag = 'input window, operand 5, single buffered']
    #allocation9 [shape = 's32[1]{0}', space=sflag, size = 0x4, scoped, tag = 'scoped memory for tpu_custom_call.1']
    #allocation10 [shape = 'u8[524288]{0}', space=vmem, size = 0x80000, scoped, tag = 'output window, operand 0']
    %12 = vsyncpa [#allocation3], 0
    %s13 = scalar_lea.sflag [#allocation3], 1
    %14 = vsyncpa %s13, 0
    %15 = vsyncpa [#allocation6], 0
    %16 = vsyncpa [#allocation9], 0
    %17 = vsyncpa [#allocation4], 0
    %s18 = scalar_lea.sflag [#allocation4], 1
    %19 = vsyncpa %s18, 0
    loop: start=0, step=1, limit=4
    $region2: #{tpu_custom_call.1} parent=1 // loop_pre_header
      _
    $region3: #{tpu_custom_call.1} parent=1 // loop_header
      %s21 = sphi 0, %s25
      %p22 = scmp.ge.s32.totalorder %s21, 4
      %s31 = sphi 0, %s33
      %s34 = sphi 0, %s31
      %s35 = sphi 0, %s34
      %s51 = sphi 0, %s35
      %s55 = sphi 0, %s55
      %s57 = sphi 0, %s55
      %s58 = sphi 0, %s57
      %s72 = sphi 0, %s58
      %s76 = sphi 0, %s76
      %s78 = sphi 0, %s76
      %s79 = sphi 0, %s78
      %s93 = sphi 0, %s79
      %s97 = sphi 0, %s97
      %s99 = sphi 0, %s97
      %s100 = sphi 0, %s99
      %s114 = sphi 0, %s100
      %s118 = sphi 0, %s118
      %s120 = sphi 0, %s118
      %s121 = sphi 0, %s120
      %s135 = sphi 0, %s121
      %s139 = sphi 0, %s139
      %s141 = sphi 0, %s139
      %s142 = sphi 0, %s141
      %s156 = sphi 0, %s142
      %s160 = sphi 0, %s160
      %s162 = sphi 0, %s160
      %s163 = sphi 0, %s162
      %s177 = sphi 0, %s163
      %s183 = sphi 0, %s185
      %s186 = sphi 0, %s183
      %s187 = sphi 0, %s186
      %s203 = sphi 0, %s187
    $region4: #{tpu_custom_call.1} parent=1 // loop_header_branch
      %24 = sbr.rel (%p22) target = $region8
    $region5: #{tpu_custom_call.1} parent=1 // loop_body
      %s26 = ssub.s32 %s21, 1
      %s27 = ssub.s32 %s21, 2
      %s28 = sadd.s32 %s21, 1
      %s29 = ssub.s32 %s21, %s28
      %p30 = scmp.eq.s32.totalorder %s29, 0
      %s32 = sadd.s32 %s31, 1
      %s33 = scalar_select %p30, %s31, %s32
      %p36 = pneg %p30
      %p37 = scmp.eq.s32.totalorder %s21, 1
      %p38 = por %p36, %p37
      %p39 = scmp.ne.s32.totalorder %s31, %s34
      %p40 = scmp.eq.s32.totalorder %s21, 0
      %p41 = por %p39, %p40
      %p42 = scmp.ne.s32.totalorder %s31, %s34
      %p43 = scmp.eq.s32.totalorder %s26, 1
      %p44 = por %p42, %p43
      %p45 = scmp.ne.s32.totalorder %s34, %s35
      %p46 = scmp.eq.s32.totalorder %s26, 0
      %p47 = por %p45, %p46
      %p48 = scmp.ne.s32.totalorder %s34, %s35
      %p49 = scmp.eq.s32.totalorder %s27, 1
      %p50 = por %p48, %p49
      %p52 = scmp.ne.s32.totalorder %s35, %s51
      %p53 = scmp.eq.s32.totalorder %s27, 0
      %p54 = por %p52, %p53
      %s56 = sadd.s32 %s55, 1
      %p59 = scmp.eq.s32.totalorder %s21, 1
      %p60 = scmp.ne.s32.totalorder %s55, %s57
      %p61 = scmp.eq.s32.totalorder %s21, 0
      %p62 = por %p60, %p61
      %p63 = scmp.ne.s32.totalorder %s55, %s57
      %p64 = scmp.eq.s32.totalorder %s26, 1
      %p65 = por %p63, %p64
      %p66 = scmp.ne.s32.totalorder %s57, %s58
      %p67 = scmp.eq.s32.totalorder %s26, 0
      %p68 = por %p66, %p67
      %p69 = scmp.ne.s32.totalorder %s57, %s58
      %p70 = scmp.eq.s32.totalorder %s27, 1
      %p71 = por %p69, %p70
      %p73 = scmp.ne.s32.totalorder %s58, %s72
      %p74 = scmp.eq.s32.totalorder %s27, 0
      %p75 = por %p73, %p74
      %s77 = sadd.s32 %s76, 1
      %p80 = scmp.eq.s32.totalorder %s21, 1
      %p81 = scmp.ne.s32.totalorder %s76, %s78
      %p82 = scmp.eq.s32.totalorder %s21, 0
      %p83 = por %p81, %p82
      %p84 = scmp.ne.s32.totalorder %s76, %s78
      %p85 = scmp.eq.s32.totalorder %s26, 1
      %p86 = por %p84, %p85
      %p87 = scmp.ne.s32.totalorder %s78, %s79
      %p88 = scmp.eq.s32.totalorder %s26, 0
      %p89 = por %p87, %p88
      %p90 = scmp.ne.s32.totalorder %s78, %s79
      %p91 = scmp.eq.s32.totalorder %s27, 1
      %p92 = por %p90, %p91
      %p94 = scmp.ne.s32.totalorder %s79, %s93
      %p95 = scmp.eq.s32.totalorder %s27, 0
      %p96 = por %p94, %p95
      %s98 = sadd.s32 %s97, 1
      %p101 = scmp.eq.s32.totalorder %s21, 1
      %p102 = scmp.ne.s32.totalorder %s97, %s99
      %p103 = scmp.eq.s32.totalorder %s21, 0
      %p104 = por %p102, %p103
      %p105 = scmp.ne.s32.totalorder %s97, %s99
      %p106 = scmp.eq.s32.totalorder %s26, 1
      %p107 = por %p105, %p106
      %p108 = scmp.ne.s32.totalorder %s99, %s100
      %p109 = scmp.eq.s32.totalorder %s26, 0
      %p110 = por %p108, %p109
      %p111 = scmp.ne.s32.totalorder %s99, %s100
      %p112 = scmp.eq.s32.totalorder %s27, 1
      %p113 = por %p111, %p112
      %p115 = scmp.ne.s32.totalorder %s100, %s114
      %p116 = scmp.eq.s32.totalorder %s27, 0
      %p117 = por %p115, %p116
      %s119 = sadd.s32 %s118, 1
      %p122 = scmp.eq.s32.totalorder %s21, 1
      %p123 = scmp.ne.s32.totalorder %s118, %s120
      %p124 = scmp.eq.s32.totalorder %s21, 0
      %p125 = por %p123, %p124
      %p126 = scmp.ne.s32.totalorder %s118, %s120
      %p127 = scmp.eq.s32.totalorder %s26, 1
      %p128 = por %p126, %p127
      %p129 = scmp.ne.s32.totalorder %s120, %s121
      %p130 = scmp.eq.s32.totalorder %s26, 0
      %p131 = por %p129, %p130
      %p132 = scmp.ne.s32.totalorder %s120, %s121
      %p133 = scmp.eq.s32.totalorder %s27, 1
      %p134 = por %p132, %p133
      %p136 = scmp.ne.s32.totalorder %s121, %s135
      %p137 = scmp.eq.s32.totalorder %s27, 0
      %p138 = por %p136, %p137
      %s140 = sadd.s32 %s139, 1
      %p143 = scmp.eq.s32.totalorder %s21, 1
      %p144 = scmp.ne.s32.totalorder %s139, %s141
      %p145 = scmp.eq.s32.totalorder %s21, 0
      %p146 = por %p144, %p145
      %p147 = scmp.ne.s32.totalorder %s139, %s141
      %p148 = scmp.eq.s32.totalorder %s26, 1
      %p149 = por %p147, %p148
      %p150 = scmp.ne.s32.totalorder %s141, %s142
      %p151 = scmp.eq.s32.totalorder %s26, 0
      %p152 = por %p150, %p151
      %p153 = scmp.ne.s32.totalorder %s141, %s142
      %p154 = scmp.eq.s32.totalorder %s27, 1
      %p155 = por %p153, %p154
      %p157 = scmp.ne.s32.totalorder %s142, %s156
      %p158 = scmp.eq.s32.totalorder %s27, 0
      %p159 = por %p157, %p158
      %s161 = sadd.s32 %s160, 1
      %p164 = scmp.eq.s32.totalorder %s21, 1
      %p165 = scmp.ne.s32.totalorder %s160, %s162
      %p166 = scmp.eq.s32.totalorder %s21, 0
      %p167 = por %p165, %p166
      %p168 = scmp.ne.s32.totalorder %s160, %s162
      %p169 = scmp.eq.s32.totalorder %s26, 1
      %p170 = por %p168, %p169
      %p171 = scmp.ne.s32.totalorder %s162, %s163
      %p172 = scmp.eq.s32.totalorder %s26, 0
      %p173 = por %p171, %p172
      %p174 = scmp.ne.s32.totalorder %s162, %s163
      %p175 = scmp.eq.s32.totalorder %s27, 1
      %p176 = por %p174, %p175
      %p178 = scmp.ne.s32.totalorder %s163, %s177
      %p179 = scmp.eq.s32.totalorder %s27, 0
      %p180 = por %p178, %p179
      %s181 = ssub.s32 %s21, %s28
      %p182 = scmp.eq.s32.totalorder %s181, 0
      %s184 = sadd.s32 %s183, 1
      %s185 = scalar_select %p182, %s183, %s184
      %p188 = pneg %p182
      %p189 = scmp.eq.s32.totalorder %s21, 1
      %p190 = por %p188, %p189
      %p191 = scmp.ne.s32.totalorder %s183, %s186
      %p192 = scmp.eq.s32.totalorder %s21, 0
      %p193 = por %p191, %p192
      %p194 = scmp.ne.s32.totalorder %s183, %s186
      %p195 = scmp.eq.s32.totalorder %s26, 1
      %p196 = por %p194, %p195
      %p197 = scmp.ne.s32.totalorder %s186, %s187
      %p198 = scmp.eq.s32.totalorder %s26, 0
      %p199 = por %p197, %p198
      %p200 = scmp.ne.s32.totalorder %s186, %s187
      %p201 = scmp.eq.s32.totalorder %s27, 1
      %p202 = por %p200, %p201
      %p204 = scmp.ne.s32.totalorder %s187, %s203
      %p205 = scmp.eq.s32.totalorder %s27, 0
      %p206 = por %p204, %p205
      %p207 = scmp.le.s32.totalorder 1, %s21
      %p208 = scmp.lt.s32.totalorder %s21, 3
      %p209 = pnand %p207, %p208
      %p210 = pneg %p209
      // Predicated region
      $region9: #{tpu_custom_call.1} parent=5 // pred_check
        _
      $region10: #{tpu_custom_call.1} parent=5 // pred_check_branch
        %212 = sbr.rel (%p209) target = $region12
      $region11: #{tpu_custom_call.1} parent=5 // pred_region
        %s213 = ssub.s32 %s21, 1
        // Predicated region
        $region13: #{tpu_custom_call.1} parent=11 // pred_check
          %p214 = pneg %p68
        $region14: #{tpu_custom_call.1} parent=11 // pred_check_branch
          %216 = sbr.rel (%p214) target = $region16
        $region15: #{tpu_custom_call.1} parent=11 // pred_region
          %s218 = ssub.s32 2048, 2048
          %219 = vsyncadd [#allocation6], %s218
          %s220 = sshll.u32 [#allocation5], 4
          %s221 = int_to_ptr.vmem [resolvable:$true] %s220
          %226 = dma.hbm_to_vmem [thread:$0]  %s1, 2048, %s221, [#allocation6], 128, 128, 8
        $region16: #{tpu_custom_call.1} parent=11 // pred_fallthru
          _
        // Predicated region
        $region17: #{tpu_custom_call.1} parent=11 // pred_check
          %p227 = pneg %p89
        $region18: #{tpu_custom_call.1} parent=11 // pred_check_branch
          %229 = sbr.rel (%p227) target = $region20
        $region19: #{tpu_custom_call.1} parent=11 // pred_region
          _
        $region20: #{tpu_custom_call.1} parent=11 // pred_fallthru
          _
        // Predicated region
        $region21: #{tpu_custom_call.1} parent=11 // pred_check
          %p230 = pneg %p110
        $region22: #{tpu_custom_call.1} parent=11 // pred_check_branch
          %232 = sbr.rel (%p230) target = $region24
        $region23: #{tpu_custom_call.1} parent=11 // pred_region
          %s234 = ssub.s32 2048, 2048
          %235 = vsyncadd [#allocation6], %s234
          %s236 = sshll.u32 [#allocation7], 4
          %s237 = int_to_ptr.vmem [resolvable:$true] %s236
          %242 = dma.hbm_to_vmem [thread:$0]  %s3, 2048, %s237, [#allocation6], 128, 128, 8
        $region24: #{tpu_custom_call.1} parent=11 // pred_fallthru
          _
        // Predicated region
        $region25: #{tpu_custom_call.1} parent=11 // pred_check
          %p243 = pneg %p131
        $region26: #{tpu_custom_call.1} parent=11 // pred_check_branch
          %245 = sbr.rel (%p243) target = $region28
        $region27: #{tpu_custom_call.1} parent=11 // pred_region
          _
        $region28: #{tpu_custom_call.1} parent=11 // pred_fallthru
          _
        // Predicated region
        $region29: #{tpu_custom_call.1} parent=11 // pred_check
          %p246 = pneg %p152
        $region30: #{tpu_custom_call.1} parent=11 // pred_check_branch
          %248 = sbr.rel (%p246) target = $region32
        $region31: #{tpu_custom_call.1} parent=11 // pred_region
          %s250 = ssub.s32 2048, 2048
          %251 = vsyncadd [#allocation9], %s250
          %s252 = sshll.u32 [#allocation8], 4
          %s253 = int_to_ptr.vmem [resolvable:$true] %s252
          %258 = dma.hbm_to_vmem [thread:$0]  %s5, 2048, %s253, [#allocation9], 128, 128, 8
        $region32: #{tpu_custom_call.1} parent=11 // pred_fallthru
          _
        // Predicated region
        $region33: #{tpu_custom_call.1} parent=11 // pred_check
          %p259 = pneg %p173
        $region34: #{tpu_custom_call.1} parent=11 // pred_check_branch
          %261 = sbr.rel (%p259) target = $region36
        $region35: #{tpu_custom_call.1} parent=11 // pred_region
          _
        $region36: #{tpu_custom_call.1} parent=11 // pred_fallthru
          _
      $region12: #{tpu_custom_call.1} parent=5 // pred_fallthru
        _
      %p262 = scmp.lt.s32.totalorder %s21, 2
      // Predicated region
      $region37: #{tpu_custom_call.1} parent=5 // pred_check
        %p263 = pneg %p262
      $region38: #{tpu_custom_call.1} parent=5 // pred_check_branch
        %265 = sbr.rel (%p263) target = $region40
      $region39: #{tpu_custom_call.1} parent=5 // pred_region
        // Predicated region
        $region41: #{tpu_custom_call.1} parent=39 // pred_check
          %p266 = pneg %p41
        $region42: #{tpu_custom_call.1} parent=39 // pred_check_branch
          %268 = sbr.rel (%p266) target = $region44
        $region43: #{tpu_custom_call.1} parent=39 // pred_region
          %s269 = sand.u32 %s31, 1
          %s270 = scalar_lea.sflag [#allocation3], %s269
          %s271 = sand.u32 %s31, 1
          %s272 = smul.addr %s271, 512
          %s273 = scalar_lea.vmem [#allocation2], %s272
          %s274 = smul.u32 64, %s21
          %s276 = ssub.s32 8192, 8192
          %277 = vsyncadd %s270, %s276
          %s278 = smul.addr %s274, 128
          %s279 = scalar_lea.hbm %s0, %s278
          %s280 = sshll.u32 %s273, 4
          %s281 = int_to_ptr.vmem [resolvable:$true] %s280
          %286 = dma.hbm_to_vmem [thread:$0]  %s279, 8192, %s281, %s270, 128, 128, 8
        $region44: #{tpu_custom_call.1} parent=39 // pred_fallthru
          _
      $region40: #{tpu_custom_call.1} parent=5 // pred_fallthru
        _
      %p287 = scmp.le.s32.totalorder 1, %s21
      %p288 = scmp.lt.s32.totalorder %s21, 3
      %p289 = pnand %p287, %p288
      %p290 = pneg %p289
      // Predicated region
      $region45: #{tpu_custom_call.1} parent=5 // pred_check
        _
      $region46: #{tpu_custom_call.1} parent=5 // pred_check_branch
        %292 = sbr.rel (%p289) target = $region48
      $region47: #{tpu_custom_call.1} parent=5 // pred_region
        %s293 = ssub.s32 %s21, 1
        %s294 = sand.u32 %s34, 1
        %s295 = scalar_lea.sflag [#allocation3], %s294
        %s296 = sand.u32 %s34, 1
        %s297 = smul.addr %s296, 512
        %s298 = scalar_lea.vmem [#allocation2], %s297
        // Predicated region
        $region49: #{tpu_custom_call.1} parent=47 // pred_check
          %p299 = pneg %p47
        $region50: #{tpu_custom_call.1} parent=47 // pred_check_branch
          %301 = sbr.rel (%p299) target = $region52
        $region51: #{tpu_custom_call.1} parent=47 // pred_region
          %302 = dma.done %s295, 8192
        $region52: #{tpu_custom_call.1} parent=47 // pred_fallthru
          _
        // Predicated region
        $region53: #{tpu_custom_call.1} parent=47 // pred_check
          %p303 = pneg %p68
        $region54: #{tpu_custom_call.1} parent=47 // pred_check_branch
          %305 = sbr.rel (%p303) target = $region56
        $region55: #{tpu_custom_call.1} parent=47 // pred_region
          %306 = dma.done [#allocation6], 2048
        $region56: #{tpu_custom_call.1} parent=47 // pred_fallthru
          _
        // Predicated region
        $region57: #{tpu_custom_call.1} parent=47 // pred_check
          %p307 = pneg %p110
        $region58: #{tpu_custom_call.1} parent=47 // pred_check_branch
          %309 = sbr.rel (%p307) target = $region60
        $region59: #{tpu_custom_call.1} parent=47 // pred_region
          %310 = dma.done [#allocation6], 2048
        $region60: #{tpu_custom_call.1} parent=47 // pred_fallthru
          _
        // Predicated region
        $region61: #{tpu_custom_call.1} parent=47 // pred_check
          %p311 = pneg %p152
        $region62: #{tpu_custom_call.1} parent=47 // pred_check_branch
          %313 = sbr.rel (%p311) target = $region64
        $region63: #{tpu_custom_call.1} parent=47 // pred_region
          %314 = dma.done [#allocation9], 2048
        $region64: #{tpu_custom_call.1} parent=47 // pred_fallthru
          _
        %s315 = sand.u32 %s34, 1
        %s316 = scalar_lea.sflag [#allocation3], %s315
        %s317 = sand.u32 %s34, 1
        %s318 = smul.addr %s317, 512
        %s319 = scalar_lea.vmem [#allocation2], %s318
        %p320 = pneg %p47
        %p321 = pneg %p44
        %p322 = pneg %p68
        %p323 = pneg %p65
        %p324 = pneg %p89
        %p325 = pneg %p86
        %p326 = pneg %p110
        %p327 = pneg %p107
        %p328 = pneg %p131
        %p329 = pneg %p128
        %p330 = pneg %p152
        %p331 = pneg %p149
        %p332 = pneg %p173
        %p333 = pneg %p170
        %p334 = pneg %p199
        %p335 = pneg %p196
        %s336 = sand.u32 %s186, 1
        %s337 = scalar_lea.sflag [#allocation4], %s336
        %s338 = sand.u32 %s186, 1
        %s339 = smul.addr %s338, 512
        %s340 = scalar_lea.vmem [#allocation10], %s339
        %s341 = smul.u32 64, %s26
        %s342 = smul.u32 64, %s26
        %v343 = vld [vmem:[%s298] sm:$0xff]
        %v344 = vld [vmem:[%s298 + $0x8] sm:$0xff]
        %v345 = vld [vmem:[%s298 + $0x10] sm:$0xff]
        %v346 = vld [vmem:[%s298 + $0x18] sm:$0xff]
        %v347 = vld [vmem:[%s298 + $0x20] sm:$0xff]
        %v348 = vld [vmem:[%s298 + $0x28] sm:$0xff]
        %v349 = vld [vmem:[%s298 + $0x30] sm:$0xff]
        %v350 = vld [vmem:[%s298 + $0x38] sm:$0xff]
        %v351 = vld [vmem:[%s298 + $0x40] sm:$0xff]
        %v352 = vld [vmem:[%s298 + $0x48] sm:$0xff]
        %v353 = vld [vmem:[%s298 + $0x50] sm:$0xff]
        %v354 = vld [vmem:[%s298 + $0x58] sm:$0xff]
        %v355 = vld [vmem:[%s298 + $0x60] sm:$0xff]
        %v356 = vld [vmem:[%s298 + $0x68] sm:$0xff]
        %v357 = vld [vmem:[%s298 + $0x70] sm:$0xff]
        %v358 = vld [vmem:[%s298 + $0x78] sm:$0xff]
        %v359 = vld [vmem:[%s298 + $0x80] sm:$0xff]
        %v360 = vld [vmem:[%s298 + $0x88] sm:$0xff]
        %v361 = vld [vmem:[%s298 + $0x90] sm:$0xff]
        %v362 = vld [vmem:[%s298 + $0x98] sm:$0xff]
        %v363 = vld [vmem:[%s298 + $0xa0] sm:$0xff]
        %v364 = vld [vmem:[%s298 + $0xa8] sm:$0xff]
        %v365 = vld [vmem:[%s298 + $0xb0] sm:$0xff]
        %v366 = vld [vmem:[%s298 + $0xb8] sm:$0xff]
        %v367 = vld [vmem:[%s298 + $0xc0] sm:$0xff]
        %v368 = vld [vmem:[%s298 + $0xc8] sm:$0xff]
        %v369 = vld [vmem:[%s298 + $0xd0] sm:$0xff]
        %v370 = vld [vmem:[%s298 + $0xd8] sm:$0xff]
        %v371 = vld [vmem:[%s298 + $0xe0] sm:$0xff]
        %v372 = vld [vmem:[%s298 + $0xe8] sm:$0xff]
        %v373 = vld [vmem:[%s298 + $0xf0] sm:$0xff]
        %v374 = vld [vmem:[%s298 + $0xf8] sm:$0xff]
        %v375 = vld [vmem:[%s298 + $0x100] sm:$0xff]
        %v376 = vld [vmem:[%s298 + $0x108] sm:$0xff]
        %v377 = vld [vmem:[%s298 + $0x110] sm:$0xff]
        %v378 = vld [vmem:[%s298 + $0x118] sm:$0xff]
        %v379 = vld [vmem:[%s298 + $0x120] sm:$0xff]
        %v380 = vld [vmem:[%s298 + $0x128] sm:$0xff]
        %v381 = vld [vmem:[%s298 + $0x130] sm:$0xff]
        %v382 = vld [vmem:[%s298 + $0x138] sm:$0xff]
        %v383 = vld [vmem:[%s298 + $0x140] sm:$0xff]
        %v384 = vld [vmem:[%s298 + $0x148] sm:$0xff]
        %v385 = vld [vmem:[%s298 + $0x150] sm:$0xff]
        %v386 = vld [vmem:[%s298 + $0x158] sm:$0xff]
        %v387 = vld [vmem:[%s298 + $0x160] sm:$0xff]
        %v388 = vld [vmem:[%s298 + $0x168] sm:$0xff]
        %v389 = vld [vmem:[%s298 + $0x170] sm:$0xff]
        %v390 = vld [vmem:[%s298 + $0x178] sm:$0xff]
        %v391 = vld [vmem:[%s298 + $0x180] sm:$0xff]
        %v392 = vld [vmem:[%s298 + $0x188] sm:$0xff]
        %v393 = vld [vmem:[%s298 + $0x190] sm:$0xff]
        %v394 = vld [vmem:[%s298 + $0x198] sm:$0xff]
        %v395 = vld [vmem:[%s298 + $0x1a0] sm:$0xff]
        %v396 = vld [vmem:[%s298 + $0x1a8] sm:$0xff]
        %v397 = vld [vmem:[%s298 + $0x1b0] sm:$0xff]
        %v398 = vld [vmem:[%s298 + $0x1b8] sm:$0xff]
        %v399 = vld [vmem:[%s298 + $0x1c0] sm:$0xff]
        %v400 = vld [vmem:[%s298 + $0x1c8] sm:$0xff]
        %v401 = vld [vmem:[%s298 + $0x1d0] sm:$0xff]
        %v402 = vld [vmem:[%s298 + $0x1d8] sm:$0xff]
        %v403 = vld [vmem:[%s298 + $0x1e0] sm:$0xff]
        %v404 = vld [vmem:[%s298 + $0x1e8] sm:$0xff]
        %v405 = vld [vmem:[%s298 + $0x1f0] sm:$0xff]
        %v406 = vld [vmem:[%s298 + $0x1f8] sm:$0xff]
        %v407 = vld [vmem:[#allocation5] sm:$0xff]
        %v408 = vld [vmem:[#allocation5 + $0x8] sm:$0xff]
        %v409 = vld [vmem:[#allocation5 + $0x10] sm:$0xff]
        %v410 = vld [vmem:[#allocation5 + $0x18] sm:$0xff]
        %v411 = vld [vmem:[#allocation5 + $0x20] sm:$0xff]
        %v412 = vld [vmem:[#allocation5 + $0x28] sm:$0xff]
        %v413 = vld [vmem:[#allocation5 + $0x30] sm:$0xff]
        %v414 = vld [vmem:[#allocation5 + $0x38] sm:$0xff]
        %v415 = vld [vmem:[#allocation5 + $0x40] sm:$0xff]
        %v416 = vld [vmem:[#allocation5 + $0x48] sm:$0xff]
        %v417 = vld [vmem:[#allocation5 + $0x50] sm:$0xff]
        %v418 = vld [vmem:[#allocation5 + $0x58] sm:$0xff]
        %v419 = vld [vmem:[#allocation5 + $0x60] sm:$0xff]
        %v420 = vld [vmem:[#allocation5 + $0x68] sm:$0xff]
        %v421 = vld [vmem:[#allocation5 + $0x70] sm:$0xff]
        %v422 = vld [vmem:[#allocation5 + $0x78] sm:$0xff]
        %v423 = vld [vmem:[%s2] sm:$0x1]
        %v425 = vlaneseq
        %v426 = vshrl.u32 %v425, 7
        %v427 = vsub.s32 0, %v426
        %v428 = vrot.slane %v423, %v427
        %430 = vmatprep.subr.mxu0 0.0
        %431 = vmatpush1.msra.mxu0 %v407
        %432 = vmatprep.subr.mxu0 0.0
        %433 = vmatpush1.msra.mxu0 %v408
        %434 = vmatprep.subr.mxu0 0.0
        %435 = vmatpush1.msra.mxu0 %v409
        %436 = vmatprep.subr.mxu0 0.0
        %437 = vmatpush1.msra.mxu0 %v410
        %438 = vmatprep.subr.mxu0 0.0
        %439 = vmatpush1.msra.mxu0 %v411
        %440 = vmatprep.subr.mxu0 0.0
        %441 = vmatpush1.msra.mxu0 %v412
        %442 = vmatprep.subr.mxu0 0.0
        %443 = vmatpush1.msra.mxu0 %v413
        %444 = vmatprep.subr.mxu0 0.0
        %445 = vmatpush1.msra.mxu0 %v414
        %446 = vmatprep.subr.mxu0 0.0
        %447 = vmatpush1.msra.mxu0 %v415
        %448 = vmatprep.subr.mxu0 0.0
        %449 = vmatpush1.msra.mxu0 %v416
        %450 = vmatprep.subr.mxu0 0.0
        %451 = vmatpush1.msra.mxu0 %v417
        %452 = vmatprep.subr.mxu0 0.0
        %453 = vmatpush1.msra.mxu0 %v418
        %454 = vmatprep.subr.mxu0 0.0
        %455 = vmatpush1.msra.mxu0 %v419
        %456 = vmatprep.subr.mxu0 0.0
        %457 = vmatpush1.msra.mxu0 %v420
        %458 = vmatprep.subr.mxu0 0.0
        %459 = vmatpush1.msra.mxu0 %v421
        %460 = vmatprep.subr.mxu0 0.0
        %461 = vmatpush1.msra.mxu0 %v422
        %462 = vmatprep.subr.mxu0 0.0
        %463 = vmatpush1.msra.mxu0 0.0
        %464 = vmatprep.subr.mxu0 0.0
        %465 = vmatpush1.msra.mxu0 0.0
        %466 = vmatprep.subr.mxu0 0.0
        %467 = vmatpush1.msra.mxu0 0.0
        %468 = vmatprep.subr.mxu0 0.0
        %469 = vmatpush1.msra.mxu0 0.0
        %470 = vmatprep.subr.mxu0 0.0
        %471 = vmatpush1.msra.mxu0 0.0
        %472 = vmatprep.subr.mxu0 0.0
        %473 = vmatpush1.msra.mxu0 0.0
        %474 = vmatprep.subr.mxu0 0.0
        %475 = vmatpush1.msra.mxu0 0.0
        %476 = vmatprep.subr.mxu0 0.0
        %477 = vmatpush1.msra.mxu0 0.0
        %478 = vmatprep.subr.mxu0 0.0
        %479 = vmatpush1.msra.mxu0 0.0
        %480 = vmatprep.subr.mxu0 0.0
        %481 = vmatpush1.msra.mxu0 0.0
        %482 = vmatprep.subr.mxu0 0.0
        %483 = vmatpush1.msra.mxu0 0.0
        %484 = vmatprep.subr.mxu0 0.0
        %485 = vmatpush1.msra.mxu0 0.0
        %486 = vmatprep.subr.mxu0 0.0
        %487 = vmatpush1.msra.mxu0 0.0
        %488 = vmatprep.subr.mxu0 0.0
        %489 = vmatpush1.msra.mxu0 0.0
        %490 = vmatprep.subr.mxu0 0.0
        %491 = vmatpush1.msra.mxu0 0.0
        %492 = vmatprep.subr.mxu0 0.0
        %493 = vmatpush1.msra.mxu0 0.0
        %494 = vmatprep.mubr.f32.mxu0 0.0
        %495 = vmatmul.mubr.f32.gmra.mrb[0].mxu0 %v343
        %v496 = vpop.f32.mrb[0].mxu0
        %v497 = vadd.f32 %v428, %v496
        %v498 = vpop.f32.mrb[0].mxu0
        %499 = vmatprep.mubr.f32.mxu0 0.0
        %500 = vmatmul.mubr.f32.gmra.mrb[0].mxu0 %v344
        %v501 = vpop.f32.mrb[0].mxu0
        %v502 = vadd.f32 %v428, %v501
        %v503 = vpop.f32.mrb[0].mxu0
        %504 = vmatprep.mubr.f32.mxu0 0.0
        %505 = vmatmul.mubr.f32.gmra.mrb[0].mxu0 %v345
        %v506 = vpop.f32.mrb[0].mxu0
        %v507 = vadd.f32 %v428, %v506
        %v508 = vpop.f32.mrb[0].mxu0
        %509 = vmatprep.mubr.f32.mxu0 0.0
        %510 = vmatmul.mubr.f32.gmra.mrb[0].mxu0 %v346
        %v511 = vpop.f32.mrb[0].mxu0
        %v512 = vadd.f32 %v428, %v511
        %v513 = vpop.f32.mrb[0].mxu0
        %514 = vmatprep.mubr.f32.mxu0 0.0
        %515 = vmatmul.mubr.f32.gmra.mrb[0].mxu0 %v347
        %v516 = vpop.f32.mrb[0].mxu0
        %v517 = vadd.f32 %v428, %v516
        %v518 = vpop.f32.mrb[0].mxu0
        %519 = vmatprep.mubr.f32.mxu0 0.0
        %520 = vmatmul.mubr.f32.gmra.mrb[0].mxu0 %v348
        %v521 = vpop.f32.mrb[0].mxu0
        %v522 = vadd.f32 %v428, %v521
        %v523 = vpop.f32.mrb[0].mxu0
        %524 = vmatprep.mubr.f32.mxu0 0.0
        %525 = vmatmul.mubr.f32.gmra.mrb[0].mxu0 %v349
        %v526 = vpop.f32.mrb[0].mxu0
        %v527 = vadd.f32 %v428, %v526
        %v528 = vpop.f32.mrb[0].mxu0
        %529 = vmatprep.mubr.f32.mxu0 0.0
        %530 = vmatmul.mubr.f32.gmra.mrb[0].mxu0 %v350
        %v531 = vpop.f32.mrb[0].mxu0
        %v532 = vadd.f32 %v428, %v531
        %v533 = vpop.f32.mrb[0].mxu0
        %534 = vmatprep.mubr.f32.mxu0 0.0
        %535 = vmatmul.mubr.f32.gmra.mrb[0].mxu0 %v351
        %v536 = vpop.f32.mrb[0].mxu0
        %v537 = vadd.f32 %v428, %v536
        %v538 = vpop.f32.mrb[0].mxu0
        %539 = vmatprep.mubr.f32.mxu0 0.0
        %540 = vmatmul.mubr.f32.gmra.mrb[0].mxu0 %v352
        %v541 = vpop.f32.mrb[0].mxu0
        %v542 = vadd.f32 %v428, %v541
        %v543 = vpop.f32.mrb[0].mxu0
        %544 = vmatprep.mubr.f32.mxu0 0.0
        %545 = vmatmul.mubr.f32.gmra.mrb[0].mxu0 %v353
        %v546 = vpop.f32.mrb[0].mxu0
        %v547 = vadd.f32 %v428, %v546
        %v548 = vpop.f32.mrb[0].mxu0
        %549 = vmatprep.mubr.f32.mxu0 0.0
        %550 = vmatmul.mubr.f32.gmra.mrb[0].mxu0 %v354
        %v551 = vpop.f32.mrb[0].mxu0
        %v552 = vadd.f32 %v428, %v551
        %v553 = vpop.f32.mrb[0].mxu0
        %554 = vmatprep.mubr.f32.mxu0 0.0
        %555 = vmatmul.mubr.f32.gmra.mrb[0].mxu0 %v355
        %v556 = vpop.f32.mrb[0].mxu0
        %v557 = vadd.f32 %v428, %v556
        %v558 = vpop.f32.mrb[0].mxu0
        %559 = vmatprep.mubr.f32.mxu0 0.0
        %560 = vmatmul.mubr.f32.gmra.mrb[0].mxu0 %v356
        %v561 = vpop.f32.mrb[0].mxu0
        %v562 = vadd.f32 %v428, %v561
        %v563 = vpop.f32.mrb[0].mxu0
        %564 = vmatprep.mubr.f32.mxu0 0.0
        %565 = vmatmul.mubr.f32.gmra.mrb[0].mxu0 %v357
        %v566 = vpop.f32.mrb[0].mxu0
        %v567 = vadd.f32 %v428, %v566
        %v568 = vpop.f32.mrb[0].mxu0
        %569 = vmatprep.mubr.f32.mxu0 0.0
        %570 = vmatmul.mubr.f32.gmra.mrb[0].mxu0 %v358
        %v571 = vpop.f32.mrb[0].mxu0
        %v572 = vadd.f32 %v428, %v571
        %v573 = vpop.f32.mrb[0].mxu0
        %574 = vmatprep.mubr.f32.mxu0 0.0
        %575 = vmatmul.mubr.f32.gmra.mrb[0].mxu0 %v359
        %v576 = vpop.f32.mrb[0].mxu0
        %v577 = vadd.f32 %v428, %v576
        %v578 = vpop.f32.mrb[0].mxu0
        %579 = vmatprep.mubr.f32.mxu0 0.0
        %580 = vmatmul.mubr.f32.gmra.mrb[0].mxu0 %v360
        %v581 = vpop.f32.mrb[0].mxu0
        %v582 = vadd.f32 %v428, %v581
        %v583 = vpop.f32.mrb[0].mxu0
        %584 = vmatprep.mubr.f32.mxu0 0.0
        %585 = vmatmul.mubr.f32.gmra.mrb[0].mxu0 %v361
        %v586 = vpop.f32.mrb[0].mxu0
        %v587 = vadd.f32 %v428, %v586
        %v588 = vpop.f32.mrb[0].mxu0
        %589 = vmatprep.mubr.f32.mxu0 0.0
        %590 = vmatmul.mubr.f32.gmra.mrb[0].mxu0 %v362
        %v591 = vpop.f32.mrb[0].mxu0
        %v592 = vadd.f32 %v428, %v591
        %v593 = vpop.f32.mrb[0].mxu0
        %594 = vmatprep.mubr.f32.mxu0 0.0
        %595 = vmatmul.mubr.f32.gmra.mrb[0].mxu0 %v363
        %v596 = vpop.f32.mrb[0].mxu0
        %v597 = vadd.f32 %v428, %v596
        %v598 = vpop.f32.mrb[0].mxu0
        %599 = vmatprep.mubr.f32.mxu0 0.0
        %600 = vmatmul.mubr.f32.gmra.mrb[0].mxu0 %v364
        %v601 = vpop.f32.mrb[0].mxu0
        %v602 = vadd.f32 %v428, %v601
        %v603 = vpop.f32.mrb[0].mxu0
        %604 = vmatprep.mubr.f32.mxu0 0.0
        %605 = vmatmul.mubr.f32.gmra.mrb[0].mxu0 %v365
        %v606 = vpop.f32.mrb[0].mxu0
        %v607 = vadd.f32 %v428, %v606
        %v608 = vpop.f32.mrb[0].mxu0
        %609 = vmatprep.mubr.f32.mxu0 0.0
        %610 = vmatmul.mubr.f32.gmra.mrb[0].mxu0 %v366
        %v611 = vpop.f32.mrb[0].mxu0
        %v612 = vadd.f32 %v428, %v611
        %v613 = vpop.f32.mrb[0].mxu0
        %614 = vmatprep.mubr.f32.mxu0 0.0
        %615 = vmatmul.mubr.f32.gmra.mrb[0].mxu0 %v367
        %v616 = vpop.f32.mrb[0].mxu0
        %v617 = vadd.f32 %v428, %v616
        %v618 = vpop.f32.mrb[0].mxu0
        %619 = vmatprep.mubr.f32.mxu0 0.0
        %620 = vmatmul.mubr.f32.gmra.mrb[0].mxu0 %v368
        %v621 = vpop.f32.mrb[0].mxu0
        %v622 = vadd.f32 %v428, %v621
        %v623 = vpop.f32.mrb[0].mxu0
        %624 = vmatprep.mubr.f32.mxu0 0.0
        %625 = vmatmul.mubr.f32.gmra.mrb[0].mxu0 %v369
        %v626 = vpop.f32.mrb[0].mxu0
        %v627 = vadd.f32 %v428, %v626
        %v628 = vpop.f32.mrb[0].mxu0
        %629 = vmatprep.mubr.f32.mxu0 0.0
        %630 = vmatmul.mubr.f32.gmra.mrb[0].mxu0 %v370
        %v631 = vpop.f32.mrb[0].mxu0
        %v632 = vadd.f32 %v428, %v631
        %v633 = vpop.f32.mrb[0].mxu0
        %634 = vmatprep.mubr.f32.mxu0 0.0
        %635 = vmatmul.mubr.f32.gmra.mrb[0].mxu0 %v371
        %v636 = vpop.f32.mrb[0].mxu0
        %v637 = vadd.f32 %v428, %v636
        %v638 = vpop.f32.mrb[0].mxu0
        %639 = vmatprep.mubr.f32.mxu0 0.0
        %640 = vmatmul.mubr.f32.gmra.mrb[0].mxu0 %v372
        %v641 = vpop.f32.mrb[0].mxu0
        %v642 = vadd.f32 %v428, %v641
        %v643 = vpop.f32.mrb[0].mxu0
        %644 = vmatprep.mubr.f32.mxu0 0.0
        %645 = vmatmul.mubr.f32.gmra.mrb[0].mxu0 %v373
        %v646 = vpop.f32.mrb[0].mxu0
        %v647 = vadd.f32 %v428, %v646
        %v648 = vpop.f32.mrb[0].mxu0
        %649 = vmatprep.mubr.f32.mxu0 0.0
        %650 = vmatmul.mubr.f32.gmra.mrb[0].mxu0 %v374
        %v651 = vpop.f32.mrb[0].mxu0
        %v652 = vadd.f32 %v428, %v651
        %v653 = vpop.f32.mrb[0].mxu0
        %654 = vmatprep.mubr.f32.mxu0 0.0
        %655 = vmatmul.mubr.f32.gmra.mrb[0].mxu0 %v375
        %v656 = vpop.f32.mrb[0].mxu0
        %v657 = vadd.f32 %v428, %v656
        %v658 = vpop.f32.mrb[0].mxu0
        %659 = vmatprep.mubr.f32.mxu0 0.0
        %660 = vmatmul.mubr.f32.gmra.mrb[0].mxu0 %v376
        %v661 = vpop.f32.mrb[0].mxu0
        %v662 = vadd.f32 %v428, %v661
        %v663 = vpop.f32.mrb[0].mxu0
        %664 = vmatprep.mubr.f32.mxu0 0.0
        %665 = vmatmul.mubr.f32.gmra.mrb[0].mxu0 %v377
        %v666 = vpop.f32.mrb[0].mxu0
        %v667 = vadd.f32 %v428, %v666
        %v668 = vpop.f32.mrb[0].mxu0
        %669 = vmatprep.mubr.f32.mxu0 0.0
        %670 = vmatmul.mubr.f32.gmra.mrb[0].mxu0 %v378
        %v671 = vpop.f32.mrb[0].mxu0
        %v672 = vadd.f32 %v428, %v671
        %v673 = vpop.f32.mrb[0].mxu0
        %674 = vmatprep.mubr.f32.mxu0 0.0
        %675 = vmatmul.mubr.f32.gmra.mrb[0].mxu0 %v379
        %v676 = vpop.f32.mrb[0].mxu0
        %v677 = vadd.f32 %v428, %v676
        %v678 = vpop.f32.mrb[0].mxu0
        %679 = vmatprep.mubr.f32.mxu0 0.0
        %680 = vmatmul.mubr.f32.gmra.mrb[0].mxu0 %v380
        %v681 = vpop.f32.mrb[0].mxu0
        %v682 = vadd.f32 %v428, %v681
        %v683 = vpop.f32.mrb[0].mxu0
        %684 = vmatprep.mubr.f32.mxu0 0.0
        %685 = vmatmul.mubr.f32.gmra.mrb[0].mxu0 %v381
        %v686 = vpop.f32.mrb[0].mxu0
        %v687 = vadd.f32 %v428, %v686
        %v688 = vpop.f32.mrb[0].mxu0
        %689 = vmatprep.mubr.f32.mxu0 0.0
        %690 = vmatmul.mubr.f32.gmra.mrb[0].mxu0 %v382
        %v691 = vpop.f32.mrb[0].mxu0
        %v692 = vadd.f32 %v428, %v691
        %v693 = vpop.f32.mrb[0].mxu0
        %694 = vmatprep.mubr.f32.mxu0 0.0
        %695 = vmatmul.mubr.f32.gmra.mrb[0].mxu0 %v383
        %v696 = vpop.f32.mrb[0].mxu0
        %v697 = vadd.f32 %v428, %v696
        %v698 = vpop.f32.mrb[0].mxu0
        %699 = vmatprep.mubr.f32.mxu0 0.0
        %700 = vmatmul.mubr.f32.gmra.mrb[0].mxu0 %v384
        %v701 = vpop.f32.mrb[0].mxu0
        %v702 = vadd.f32 %v428, %v701
        %v703 = vpop.f32.mrb[0].mxu0
        %704 = vmatprep.mubr.f32.mxu0 0.0
        %705 = vmatmul.mubr.f32.gmra.mrb[0].mxu0 %v385
        %v706 = vpop.f32.mrb[0].mxu0
        %v707 = vadd.f32 %v428, %v706
        %v708 = vpop.f32.mrb[0].mxu0
        %709 = vmatprep.mubr.f32.mxu0 0.0
        %710 = vmatmul.mubr.f32.gmra.mrb[0].mxu0 %v386
        %v711 = vpop.f32.mrb[0].mxu0
        %v712 = vadd.f32 %v428, %v711
        %v713 = vpop.f32.mrb[0].mxu0
        %714 = vmatprep.mubr.f32.mxu0 0.0
        %715 = vmatmul.mubr.f32.gmra.mrb[0].mxu0 %v387
        %v716 = vpop.f32.mrb[0].mxu0
        %v717 = vadd.f32 %v428, %v716
        %v718 = vpop.f32.mrb[0].mxu0
        %719 = vmatprep.mubr.f32.mxu0 0.0
        %720 = vmatmul.mubr.f32.gmra.mrb[0].mxu0 %v388
        %v721 = vpop.f32.mrb[0].mxu0
        %v722 = vadd.f32 %v428, %v721
        %v723 = vpop.f32.mrb[0].mxu0
        %724 = vmatprep.mubr.f32.mxu0 0.0
        %725 = vmatmul.mubr.f32.gmra.mrb[0].mxu0 %v389
        %v726 = vpop.f32.mrb[0].mxu0
        %v727 = vadd.f32 %v428, %v726
        %v728 = vpop.f32.mrb[0].mxu0
        %729 = vmatprep.mubr.f32.mxu0 0.0
        %730 = vmatmul.mubr.f32.gmra.mrb[0].mxu0 %v390
        %v731 = vpop.f32.mrb[0].mxu0
        %v732 = vadd.f32 %v428, %v731
        %v733 = vpop.f32.mrb[0].mxu0
        %734 = vmatprep.mubr.f32.mxu0 0.0
        %735 = vmatmul.mubr.f32.gmra.mrb[0].mxu0 %v391
        %v736 = vpop.f32.mrb[0].mxu0
        %v737 = vadd.f32 %v428, %v736
        %v738 = vpop.f32.mrb[0].mxu0
        %739 = vmatprep.mubr.f32.mxu0 0.0
        %740 = vmatmul.mubr.f32.gmra.mrb[0].mxu0 %v392
        %v741 = vpop.f32.mrb[0].mxu0
        %v742 = vadd.f32 %v428, %v741
        %v743 = vpop.f32.mrb[0].mxu0
        %744 = vmatprep.mubr.f32.mxu0 0.0
        %745 = vmatmul.mubr.f32.gmra.mrb[0].mxu0 %v393
        %v746 = vpop.f32.mrb[0].mxu0
        %v747 = vadd.f32 %v428, %v746
        %v748 = vpop.f32.mrb[0].mxu0
        %749 = vmatprep.mubr.f32.mxu0 0.0
        %750 = vmatmul.mubr.f32.gmra.mrb[0].mxu0 %v394
        %v751 = vpop.f32.mrb[0].mxu0
        %v752 = vadd.f32 %v428, %v751
        %v753 = vpop.f32.mrb[0].mxu0
        %754 = vmatprep.mubr.f32.mxu0 0.0
        %755 = vmatmul.mubr.f32.gmra.mrb[0].mxu0 %v395
        %v756 = vpop.f32.mrb[0].mxu0
        %v757 = vadd.f32 %v428, %v756
        %v758 = vpop.f32.mrb[0].mxu0
        %759 = vmatprep.mubr.f32.mxu0 0.0
        %760 = vmatmul.mubr.f32.gmra.mrb[0].mxu0 %v396
        %v761 = vpop.f32.mrb[0].mxu0
        %v762 = vadd.f32 %v428, %v761
        %v763 = vpop.f32.mrb[0].mxu0
        %764 = vmatprep.mubr.f32.mxu0 0.0
        %765 = vmatmul.mubr.f32.gmra.mrb[0].mxu0 %v397
        %v766 = vpop.f32.mrb[0].mxu0
        %v767 = vadd.f32 %v428, %v766
        %v768 = vpop.f32.mrb[0].mxu0
        %769 = vmatprep.mubr.f32.mxu0 0.0
        %770 = vmatmul.mubr.f32.gmra.mrb[0].mxu0 %v398
        %v771 = vpop.f32.mrb[0].mxu0
        %v772 = vadd.f32 %v428, %v771
        %v773 = vpop.f32.mrb[0].mxu0
        %774 = vmatprep.mubr.f32.mxu0 0.0
        %775 = vmatmul.mubr.f32.gmra.mrb[0].mxu0 %v399
        %v776 = vpop.f32.mrb[0].mxu0
        %v777 = vadd.f32 %v428, %v776
        %v778 = vpop.f32.mrb[0].mxu0
        %779 = vmatprep.mubr.f32.mxu0 0.0
        %780 = vmatmul.mubr.f32.gmra.mrb[0].mxu0 %v400
        %v781 = vpop.f32.mrb[0].mxu0
        %v782 = vadd.f32 %v428, %v781
        %v783 = vpop.f32.mrb[0].mxu0
        %784 = vmatprep.mubr.f32.mxu0 0.0
        %785 = vmatmul.mubr.f32.gmra.mrb[0].mxu0 %v401
        %v786 = vpop.f32.mrb[0].mxu0
        %v787 = vadd.f32 %v428, %v786
        %v788 = vpop.f32.mrb[0].mxu0
        %789 = vmatprep.mubr.f32.mxu0 0.0
        %790 = vmatmul.mubr.f32.gmra.mrb[0].mxu0 %v402
        %v791 = vpop.f32.mrb[0].mxu0
        %v792 = vadd.f32 %v428, %v791
        %v793 = vpop.f32.mrb[0].mxu0
        %794 = vmatprep.mubr.f32.mxu0 0.0
        %795 = vmatmul.mubr.f32.gmra.mrb[0].mxu0 %v403
        %v796 = vpop.f32.mrb[0].mxu0
        %v797 = vadd.f32 %v428, %v796
        %v798 = vpop.f32.mrb[0].mxu0
        %799 = vmatprep.mubr.f32.mxu0 0.0
        %800 = vmatmul.mubr.f32.gmra.mrb[0].mxu0 %v404
        %v801 = vpop.f32.mrb[0].mxu0
        %v802 = vadd.f32 %v428, %v801
        %v803 = vpop.f32.mrb[0].mxu0
        %804 = vmatprep.mubr.f32.mxu0 0.0
        %805 = vmatmul.mubr.f32.gmra.mrb[0].mxu0 %v405
        %v806 = vpop.f32.mrb[0].mxu0
        %v807 = vadd.f32 %v428, %v806
        %v808 = vpop.f32.mrb[0].mxu0
        %809 = vmatprep.mubr.f32.mxu0 0.0
        %810 = vmatmul.mubr.f32.gmra.mrb[0].mxu0 %v406
        %v811 = vpop.f32.mrb[0].mxu0
        %v812 = vadd.f32 %v428, %v811
        %v813 = vpop.f32.mrb[0].mxu0
        %814 = vdwg.mxu0
        %v815 = vmax.f32 %v497, 0.0
        %v816 = vmax.f32 %v502, 0.0
        %v817 = vmax.f32 %v507, 0.0
        %v818 = vmax.f32 %v512, 0.0
        %v819 = vmax.f32 %v517, 0.0
        %v820 = vmax.f32 %v522, 0.0
        %v821 = vmax.f32 %v527, 0.0
        %v822 = vmax.f32 %v532, 0.0
        %v823 = vmax.f32 %v537, 0.0
        %v824 = vmax.f32 %v542, 0.0
        %v825 = vmax.f32 %v547, 0.0
        %v826 = vmax.f32 %v552, 0.0
        %v827 = vmax.f32 %v557, 0.0
        %v828 = vmax.f32 %v562, 0.0
        %v829 = vmax.f32 %v567, 0.0
        %v830 = vmax.f32 %v572, 0.0
        %v831 = vmax.f32 %v577, 0.0
        %v832 = vmax.f32 %v582, 0.0
        %v833 = vmax.f32 %v587, 0.0
        %v834 = vmax.f32 %v592, 0.0
        %v835 = vmax.f32 %v597, 0.0
        %v836 = vmax.f32 %v602, 0.0
        %v837 = vmax.f32 %v607, 0.0
        %v838 = vmax.f32 %v612, 0.0
        %v839 = vmax.f32 %v617, 0.0
        %v840 = vmax.f32 %v622, 0.0
        %v841 = vmax.f32 %v627, 0.0
        %v842 = vmax.f32 %v632, 0.0
        %v843 = vmax.f32 %v637, 0.0
        %v844 = vmax.f32 %v642, 0.0
        %v845 = vmax.f32 %v647, 0.0
        %v846 = vmax.f32 %v652, 0.0
        %v847 = vmax.f32 %v657, 0.0
        %v848 = vmax.f32 %v662, 0.0
        %v849 = vmax.f32 %v667, 0.0
        %v850 = vmax.f32 %v672, 0.0
        %v851 = vmax.f32 %v677, 0.0
        %v852 = vmax.f32 %v682, 0.0
        %v853 = vmax.f32 %v687, 0.0
        %v854 = vmax.f32 %v692, 0.0
        %v855 = vmax.f32 %v697, 0.0
        %v856 = vmax.f32 %v702, 0.0
        %v857 = vmax.f32 %v707, 0.0
        %v858 = vmax.f32 %v712, 0.0
        %v859 = vmax.f32 %v717, 0.0
        %v860 = vmax.f32 %v722, 0.0
        %v861 = vmax.f32 %v727, 0.0
        %v862 = vmax.f32 %v732, 0.0
        %v863 = vmax.f32 %v737, 0.0
        %v864 = vmax.f32 %v742, 0.0
        %v865 = vmax.f32 %v747, 0.0
        %v866 = vmax.f32 %v752, 0.0
        %v867 = vmax.f32 %v757, 0.0
        %v868 = vmax.f32 %v762, 0.0
        %v869 = vmax.f32 %v767, 0.0
        %v870 = vmax.f32 %v772, 0.0
        %v871 = vmax.f32 %v777, 0.0
        %v872 = vmax.f32 %v782, 0.0
        %v873 = vmax.f32 %v787, 0.0
        %v874 = vmax.f32 %v792, 0.0
        %v875 = vmax.f32 %v797, 0.0
        %v876 = vmax.f32 %v802, 0.0
        %v877 = vmax.f32 %v807, 0.0
        %v878 = vmax.f32 %v812, 0.0
        %v879 = vld [vmem:[#allocation7] sm:$0xff]
        %v880 = vld [vmem:[#allocation7 + $0x8] sm:$0xff]
        %v881 = vld [vmem:[#allocation7 + $0x10] sm:$0xff]
        %v882 = vld [vmem:[#allocation7 + $0x18] sm:$0xff]
        %v883 = vld [vmem:[#allocation7 + $0x20] sm:$0xff]
        %v884 = vld [vmem:[#allocation7 + $0x28] sm:$0xff]
        %v885 = vld [vmem:[#allocation7 + $0x30] sm:$0xff]
        %v886 = vld [vmem:[#allocation7 + $0x38] sm:$0xff]
        %v887 = vld [vmem:[#allocation7 + $0x40] sm:$0xff]
        %v888 = vld [vmem:[#allocation7 + $0x48] sm:$0xff]
        %v889 = vld [vmem:[#allocation7 + $0x50] sm:$0xff]
        %v890 = vld [vmem:[#allocation7 + $0x58] sm:$0xff]
        %v891 = vld [vmem:[#allocation7 + $0x60] sm:$0xff]
        %v892 = vld [vmem:[#allocation7 + $0x68] sm:$0xff]
        %v893 = vld [vmem:[#allocation7 + $0x70] sm:$0xff]
        %v894 = vld [vmem:[#allocation7 + $0x78] sm:$0xff]
        %v895 = vld [vmem:[%s4] sm:$0x1]
        %v897 = vlaneseq
        %v898 = vshrl.u32 %v897, 7
        %v899 = vsub.s32 0, %v898
        %v900 = vrot.slane %v895, %v899
        %902 = vmatprep.subr.mxu0 0.0
        %903 = vmatpush1.msra.mxu0 %v879
        %904 = vmatprep.subr.mxu0 0.0
        %905 = vmatpush1.msra.mxu0 %v880
        %906 = vmatprep.subr.mxu0 0.0
        %907 = vmatpush1.msra.mxu0 %v881
        %908 = vmatprep.subr.mxu0 0.0
        %909 = vmatpush1.msra.mxu0 %v882
        %910 = vmatprep.subr.mxu0 0.0
        %911 = vmatpush1.msra.mxu0 %v883
        %912 = vmatprep.subr.mxu0 0.0
        %913 = vmatpush1.msra.mxu0 %v884
        %914 = vmatprep.subr.mxu0 0.0
        %915 = vmatpush1.msra.mxu0 %v885
        %916 = vmatprep.subr.mxu0 0.0
        %917 = vmatpush1.msra.mxu0 %v886
        %918 = vmatprep.subr.mxu0 0.0
        %919 = vmatpush1.msra.mxu0 %v887
        %920 = vmatprep.subr.mxu0 0.0
        %921 = vmatpush1.msra.mxu0 %v888
        %922 = vmatprep.subr.mxu0 0.0
        %923 = vmatpush1.msra.mxu0 %v889
        %924 = vmatprep.subr.mxu0 0.0
        %925 = vmatpush1.msra.mxu0 %v890
        %926 = vmatprep.subr.mxu0 0.0
        %927 = vmatpush1.msra.mxu0 %v891
        %928 = vmatprep.subr.mxu0 0.0
        %929 = vmatpush1.msra.mxu0 %v892
        %930 = vmatprep.subr.mxu0 0.0
        %931 = vmatpush1.msra.mxu0 %v893
        %932 = vmatprep.subr.mxu0 0.0
        %933 = vmatpush1.msra.mxu0 %v894
        %934 = vmatprep.subr.mxu0 0.0
        %935 = vmatpush1.msra.mxu0 0.0
        %936 = vmatprep.subr.mxu0 0.0
        %937 = vmatpush1.msra.mxu0 0.0
        %938 = vmatprep.subr.mxu0 0.0
        %939 = vmatpush1.msra.mxu0 0.0
        %940 = vmatprep.subr.mxu0 0.0
        %941 = vmatpush1.msra.mxu0 0.0
        %942 = vmatprep.subr.mxu0 0.0
        %943 = vmatpush1.msra.mxu0 0.0
        %944 = vmatprep.subr.mxu0 0.0
        %945 = vmatpush1.msra.mxu0 0.0
        %946 = vmatprep.subr.mxu0 0.0
        %947 = vmatpush1.msra.mxu0 0.0
        %948 = vmatprep.subr.mxu0 0.0
        %949 = vmatpush1.msra.mxu0 0.0
        %950 = vmatprep.subr.mxu0 0.0
        %951 = vmatpush1.msra.mxu0 0.0
        %952 = vmatprep.subr.mxu0 0.0
        %953 = vmatpush1.msra.mxu0 0.0
        %954 = vmatprep.subr.mxu0 0.0
        %955 = vmatpush1.msra.mxu0 0.0
        %956 = vmatprep.subr.mxu0 0.0
        %957 = vmatpush1.msra.mxu0 0.0
        %958 = vmatprep.subr.mxu0 0.0
        %959 = vmatpush1.msra.mxu0 0.0
        %960 = vmatprep.subr.mxu0 0.0
        %961 = vmatpush1.msra.mxu0 0.0
        %962 = vmatprep.subr.mxu0 0.0
        %963 = vmatpush1.msra.mxu0 0.0
        %964 = vmatprep.subr.mxu0 0.0
        %965 = vmatpush1.msra.mxu0 0.0
        %966 = vmatprep.mubr.f32.mxu0 0.0
        %967 = vmatmul.mubr.f32.gmra.mrb[0].mxu0 %v815
        %v968 = vpop.f32.mrb[0].mxu0
        %v969 = vadd.f32 %v900, %v968
        %v970 = vpop.f32.mrb[0].mxu0
        %971 = vmatprep.mubr.f32.mxu0 0.0
        %972 = vmatmul.mubr.f32.gmra.mrb[0].mxu0 %v816
        %v973 = vpop.f32.mrb[0].mxu0
        %v974 = vadd.f32 %v900, %v973
        %v975 = vpop.f32.mrb[0].mxu0
        %976 = vmatprep.mubr.f32.mxu0 0.0
        %977 = vmatmul.mubr.f32.gmra.mrb[0].mxu0 %v817
        %v978 = vpop.f32.mrb[0].mxu0
        %v979 = vadd.f32 %v900, %v978
        %v980 = vpop.f32.mrb[0].mxu0
        %981 = vmatprep.mubr.f32.mxu0 0.0
        %982 = vmatmul.mubr.f32.gmra.mrb[0].mxu0 %v818
        %v983 = vpop.f32.mrb[0].mxu0
        %v984 = vadd.f32 %v900, %v983
        %v985 = vpop.f32.mrb[0].mxu0
        %986 = vmatprep.mubr.f32.mxu0 0.0
        %987 = vmatmul.mubr.f32.gmra.mrb[0].mxu0 %v819
        %v988 = vpop.f32.mrb[0].mxu0
        %v989 = vadd.f32 %v900, %v988
        %v990 = vpop.f32.mrb[0].mxu0
        %991 = vmatprep.mubr.f32.mxu0 0.0
        %992 = vmatmul.mubr.f32.gmra.mrb[0].mxu0 %v820
        %v993 = vpop.f32.mrb[0].mxu0
        %v994 = vadd.f32 %v900, %v993
        %v995 = vpop.f32.mrb[0].mxu0
        %996 = vmatprep.mubr.f32.mxu0 0.0
        %997 = vmatmul.mubr.f32.gmra.mrb[0].mxu0 %v821
        %v998 = vpop.f32.mrb[0].mxu0
        %v999 = vadd.f32 %v900, %v998
        %v1000 = vpop.f32.mrb[0].mxu0
        %1001 = vmatprep.mubr.f32.mxu0 0.0
        %1002 = vmatmul.mubr.f32.gmra.mrb[0].mxu0 %v822
        %v1003 = vpop.f32.mrb[0].mxu0
        %v1004 = vadd.f32 %v900, %v1003
        %v1005 = vpop.f32.mrb[0].mxu0
        %1006 = vmatprep.mubr.f32.mxu0 0.0
        %1007 = vmatmul.mubr.f32.gmra.mrb[0].mxu0 %v823
        %v1008 = vpop.f32.mrb[0].mxu0
        %v1009 = vadd.f32 %v900, %v1008
        %v1010 = vpop.f32.mrb[0].mxu0
        %1011 = vmatprep.mubr.f32.mxu0 0.0
        %1012 = vmatmul.mubr.f32.gmra.mrb[0].mxu0 %v824
        %v1013 = vpop.f32.mrb[0].mxu0
        %v1014 = vadd.f32 %v900, %v1013
        %v1015 = vpop.f32.mrb[0].mxu0
        %1016 = vmatprep.mubr.f32.mxu0 0.0
        %1017 = vmatmul.mubr.f32.gmra.mrb[0].mxu0 %v825
        %v1018 = vpop.f32.mrb[0].mxu0
        %v1019 = vadd.f32 %v900, %v1018
        %v1020 = vpop.f32.mrb[0].mxu0
        %1021 = vmatprep.mubr.f32.mxu0 0.0
        %1022 = vmatmul.mubr.f32.gmra.mrb[0].mxu0 %v826
        %v1023 = vpop.f32.mrb[0].mxu0
        %v1024 = vadd.f32 %v900, %v1023
        %v1025 = vpop.f32.mrb[0].mxu0
        %1026 = vmatprep.mubr.f32.mxu0 0.0
        %1027 = vmatmul.mubr.f32.gmra.mrb[0].mxu0 %v827
        %v1028 = vpop.f32.mrb[0].mxu0
        %v1029 = vadd.f32 %v900, %v1028
        %v1030 = vpop.f32.mrb[0].mxu0
        %1031 = vmatprep.mubr.f32.mxu0 0.0
        %1032 = vmatmul.mubr.f32.gmra.mrb[0].mxu0 %v828
        %v1033 = vpop.f32.mrb[0].mxu0
        %v1034 = vadd.f32 %v900, %v1033
        %v1035 = vpop.f32.mrb[0].mxu0
        %1036 = vmatprep.mubr.f32.mxu0 0.0
        %1037 = vmatmul.mubr.f32.gmra.mrb[0].mxu0 %v829
        %v1038 = vpop.f32.mrb[0].mxu0
        %v1039 = vadd.f32 %v900, %v1038
        %v1040 = vpop.f32.mrb[0].mxu0
        %1041 = vmatprep.mubr.f32.mxu0 0.0
        %1042 = vmatmul.mubr.f32.gmra.mrb[0].mxu0 %v830
        %v1043 = vpop.f32.mrb[0].mxu0
        %v1044 = vadd.f32 %v900, %v1043
        %v1045 = vpop.f32.mrb[0].mxu0
        %1046 = vmatprep.mubr.f32.mxu0 0.0
        %1047 = vmatmul.mubr.f32.gmra.mrb[0].mxu0 %v831
        %v1048 = vpop.f32.mrb[0].mxu0
        %v1049 = vadd.f32 %v900, %v1048
        %v1050 = vpop.f32.mrb[0].mxu0
        %1051 = vmatprep.mubr.f32.mxu0 0.0
        %1052 = vmatmul.mubr.f32.gmra.mrb[0].mxu0 %v832
        %v1053 = vpop.f32.mrb[0].mxu0
        %v1054 = vadd.f32 %v900, %v1053
        %v1055 = vpop.f32.mrb[0].mxu0
        %1056 = vmatprep.mubr.f32.mxu0 0.0
        %1057 = vmatmul.mubr.f32.gmra.mrb[0].mxu0 %v833
        %v1058 = vpop.f32.mrb[0].mxu0
        %v1059 = vadd.f32 %v900, %v1058
        %v1060 = vpop.f32.mrb[0].mxu0
        %1061 = vmatprep.mubr.f32.mxu0 0.0
        %1062 = vmatmul.mubr.f32.gmra.mrb[0].mxu0 %v834
        %v1063 = vpop.f32.mrb[0].mxu0
        %v1064 = vadd.f32 %v900, %v1063
        %v1065 = vpop.f32.mrb[0].mxu0
        %1066 = vmatprep.mubr.f32.mxu0 0.0
        %1067 = vmatmul.mubr.f32.gmra.mrb[0].mxu0 %v835
        %v1068 = vpop.f32.mrb[0].mxu0
        %v1069 = vadd.f32 %v900, %v1068
        %v1070 = vpop.f32.mrb[0].mxu0
        %1071 = vmatprep.mubr.f32.mxu0 0.0
        %1072 = vmatmul.mubr.f32.gmra.mrb[0].mxu0 %v836
        %v1073 = vpop.f32.mrb[0].mxu0
        %v1074 = vadd.f32 %v900, %v1073
        %v1075 = vpop.f32.mrb[0].mxu0
        %1076 = vmatprep.mubr.f32.mxu0 0.0
        %1077 = vmatmul.mubr.f32.gmra.mrb[0].mxu0 %v837
        %v1078 = vpop.f32.mrb[0].mxu0
        %v1079 = vadd.f32 %v900, %v1078
        %v1080 = vpop.f32.mrb[0].mxu0
        %1081 = vmatprep.mubr.f32.mxu0 0.0
        %1082 = vmatmul.mubr.f32.gmra.mrb[0].mxu0 %v838
        %v1083 = vpop.f32.mrb[0].mxu0
        %v1084 = vadd.f32 %v900, %v1083
        %v1085 = vpop.f32.mrb[0].mxu0
        %1086 = vmatprep.mubr.f32.mxu0 0.0
        %1087 = vmatmul.mubr.f32.gmra.mrb[0].mxu0 %v839
        %v1088 = vpop.f32.mrb[0].mxu0
        %v1089 = vadd.f32 %v900, %v1088
        %v1090 = vpop.f32.mrb[0].mxu0
        %1091 = vmatprep.mubr.f32.mxu0 0.0
        %1092 = vmatmul.mubr.f32.gmra.mrb[0].mxu0 %v840
        %v1093 = vpop.f32.mrb[0].mxu0
        %v1094 = vadd.f32 %v900, %v1093
        %v1095 = vpop.f32.mrb[0].mxu0
        %1096 = vmatprep.mubr.f32.mxu0 0.0
        %1097 = vmatmul.mubr.f32.gmra.mrb[0].mxu0 %v841
        %v1098 = vpop.f32.mrb[0].mxu0
        %v1099 = vadd.f32 %v900, %v1098
        %v1100 = vpop.f32.mrb[0].mxu0
        %1101 = vmatprep.mubr.f32.mxu0 0.0
        %1102 = vmatmul.mubr.f32.gmra.mrb[0].mxu0 %v842
        %v1103 = vpop.f32.mrb[0].mxu0
        %v1104 = vadd.f32 %v900, %v1103
        %v1105 = vpop.f32.mrb[0].mxu0
        %1106 = vmatprep.mubr.f32.mxu0 0.0
        %1107 = vmatmul.mubr.f32.gmra.mrb[0].mxu0 %v843
        %v1108 = vpop.f32.mrb[0].mxu0
        %v1109 = vadd.f32 %v900, %v1108
        %v1110 = vpop.f32.mrb[0].mxu0
        %1111 = vmatprep.mubr.f32.mxu0 0.0
        %1112 = vmatmul.mubr.f32.gmra.mrb[0].mxu0 %v844
        %v1113 = vpop.f32.mrb[0].mxu0
        %v1114 = vadd.f32 %v900, %v1113
        %v1115 = vpop.f32.mrb[0].mxu0
        %1116 = vmatprep.mubr.f32.mxu0 0.0
        %1117 = vmatmul.mubr.f32.gmra.mrb[0].mxu0 %v845
        %v1118 = vpop.f32.mrb[0].mxu0
        %v1119 = vadd.f32 %v900, %v1118
        %v1120 = vpop.f32.mrb[0].mxu0
        %1121 = vmatprep.mubr.f32.mxu0 0.0
        %1122 = vmatmul.mubr.f32.gmra.mrb[0].mxu0 %v846
        %v1123 = vpop.f32.mrb[0].mxu0
        %v1124 = vadd.f32 %v900, %v1123
        %v1125 = vpop.f32.mrb[0].mxu0
        %1126 = vmatprep.mubr.f32.mxu0 0.0
        %1127 = vmatmul.mubr.f32.gmra.mrb[0].mxu0 %v847
        %v1128 = vpop.f32.mrb[0].mxu0
        %v1129 = vadd.f32 %v900, %v1128
        %v1130 = vpop.f32.mrb[0].mxu0
        %1131 = vmatprep.mubr.f32.mxu0 0.0
        %1132 = vmatmul.mubr.f32.gmra.mrb[0].mxu0 %v848
        %v1133 = vpop.f32.mrb[0].mxu0
        %v1134 = vadd.f32 %v900, %v1133
        %v1135 = vpop.f32.mrb[0].mxu0
        %1136 = vmatprep.mubr.f32.mxu0 0.0
        %1137 = vmatmul.mubr.f32.gmra.mrb[0].mxu0 %v849
        %v1138 = vpop.f32.mrb[0].mxu0
        %v1139 = vadd.f32 %v900, %v1138
        %v1140 = vpop.f32.mrb[0].mxu0
        %1141 = vmatprep.mubr.f32.mxu0 0.0
        %1142 = vmatmul.mubr.f32.gmra.mrb[0].mxu0 %v850
        %v1143 = vpop.f32.mrb[0].mxu0
        %v1144 = vadd.f32 %v900, %v1143
        %v1145 = vpop.f32.mrb[0].mxu0
        %1146 = vmatprep.mubr.f32.mxu0 0.0
        %1147 = vmatmul.mubr.f32.gmra.mrb[0].mxu0 %v851
        %v1148 = vpop.f32.mrb[0].mxu0
        %v1149 = vadd.f32 %v900, %v1148
        %v1150 = vpop.f32.mrb[0].mxu0
        %1151 = vmatprep.mubr.f32.mxu0 0.0
        %1152 = vmatmul.mubr.f32.gmra.mrb[0].mxu0 %v852
        %v1153 = vpop.f32.mrb[0].mxu0
        %v1154 = vadd.f32 %v900, %v1153
        %v1155 = vpop.f32.mrb[0].mxu0
        %1156 = vmatprep.mubr.f32.mxu0 0.0
        %1157 = vmatmul.mubr.f32.gmra.mrb[0].mxu0 %v853
        %v1158 = vpop.f32.mrb[0].mxu0
        %v1159 = vadd.f32 %v900, %v1158
        %v1160 = vpop.f32.mrb[0].mxu0
        %1161 = vmatprep.mubr.f32.mxu0 0.0
        %1162 = vmatmul.mubr.f32.gmra.mrb[0].mxu0 %v854
        %v1163 = vpop.f32.mrb[0].mxu0
        %v1164 = vadd.f32 %v900, %v1163
        %v1165 = vpop.f32.mrb[0].mxu0
        %1166 = vmatprep.mubr.f32.mxu0 0.0
        %1167 = vmatmul.mubr.f32.gmra.mrb[0].mxu0 %v855
        %v1168 = vpop.f32.mrb[0].mxu0
        %v1169 = vadd.f32 %v900, %v1168
        %v1170 = vpop.f32.mrb[0].mxu0
        %1171 = vmatprep.mubr.f32.mxu0 0.0
        %1172 = vmatmul.mubr.f32.gmra.mrb[0].mxu0 %v856
        %v1173 = vpop.f32.mrb[0].mxu0
        %v1174 = vadd.f32 %v900, %v1173
        %v1175 = vpop.f32.mrb[0].mxu0
        %1176 = vmatprep.mubr.f32.mxu0 0.0
        %1177 = vmatmul.mubr.f32.gmra.mrb[0].mxu0 %v857
        %v1178 = vpop.f32.mrb[0].mxu0
        %v1179 = vadd.f32 %v900, %v1178
        %v1180 = vpop.f32.mrb[0].mxu0
        %1181 = vmatprep.mubr.f32.mxu0 0.0
        %1182 = vmatmul.mubr.f32.gmra.mrb[0].mxu0 %v858
        %v1183 = vpop.f32.mrb[0].mxu0
        %v1184 = vadd.f32 %v900, %v1183
        %v1185 = vpop.f32.mrb[0].mxu0
        %1186 = vmatprep.mubr.f32.mxu0 0.0
        %1187 = vmatmul.mubr.f32.gmra.mrb[0].mxu0 %v859
        %v1188 = vpop.f32.mrb[0].mxu0
        %v1189 = vadd.f32 %v900, %v1188
        %v1190 = vpop.f32.mrb[0].mxu0
        %1191 = vmatprep.mubr.f32.mxu0 0.0
        %1192 = vmatmul.mubr.f32.gmra.mrb[0].mxu0 %v860
        %v1193 = vpop.f32.mrb[0].mxu0
        %v1194 = vadd.f32 %v900, %v1193
        %v1195 = vpop.f32.mrb[0].mxu0
        %1196 = vmatprep.mubr.f32.mxu0 0.0
        %1197 = vmatmul.mubr.f32.gmra.mrb[0].mxu0 %v861
        %v1198 = vpop.f32.mrb[0].mxu0
        %v1199 = vadd.f32 %v900, %v1198
        %v1200 = vpop.f32.mrb[0].mxu0
        %1201 = vmatprep.mubr.f32.mxu0 0.0
        %1202 = vmatmul.mubr.f32.gmra.mrb[0].mxu0 %v862
        %v1203 = vpop.f32.mrb[0].mxu0
        %v1204 = vadd.f32 %v900, %v1203
        %v1205 = vpop.f32.mrb[0].mxu0
        %1206 = vmatprep.mubr.f32.mxu0 0.0
        %1207 = vmatmul.mubr.f32.gmra.mrb[0].mxu0 %v863
        %v1208 = vpop.f32.mrb[0].mxu0
        %v1209 = vadd.f32 %v900, %v1208
        %v1210 = vpop.f32.mrb[0].mxu0
        %1211 = vmatprep.mubr.f32.mxu0 0.0
        %1212 = vmatmul.mubr.f32.gmra.mrb[0].mxu0 %v864
        %v1213 = vpop.f32.mrb[0].mxu0
        %v1214 = vadd.f32 %v900, %v1213
        %v1215 = vpop.f32.mrb[0].mxu0
        %1216 = vmatprep.mubr.f32.mxu0 0.0
        %1217 = vmatmul.mubr.f32.gmra.mrb[0].mxu0 %v865
        %v1218 = vpop.f32.mrb[0].mxu0
        %v1219 = vadd.f32 %v900, %v1218
        %v1220 = vpop.f32.mrb[0].mxu0
        %1221 = vmatprep.mubr.f32.mxu0 0.0
        %1222 = vmatmul.mubr.f32.gmra.mrb[0].mxu0 %v866
        %v1223 = vpop.f32.mrb[0].mxu0
        %v1224 = vadd.f32 %v900, %v1223
        %v1225 = vpop.f32.mrb[0].mxu0
        %1226 = vmatprep.mubr.f32.mxu0 0.0
        %1227 = vmatmul.mubr.f32.gmra.mrb[0].mxu0 %v867
        %v1228 = vpop.f32.mrb[0].mxu0
        %v1229 = vadd.f32 %v900, %v1228
        %v1230 = vpop.f32.mrb[0].mxu0
        %1231 = vmatprep.mubr.f32.mxu0 0.0
        %1232 = vmatmul.mubr.f32.gmra.mrb[0].mxu0 %v868
        %v1233 = vpop.f32.mrb[0].mxu0
        %v1234 = vadd.f32 %v900, %v1233
        %v1235 = vpop.f32.mrb[0].mxu0
        %1236 = vmatprep.mubr.f32.mxu0 0.0
        %1237 = vmatmul.mubr.f32.gmra.mrb[0].mxu0 %v869
        %v1238 = vpop.f32.mrb[0].mxu0
        %v1239 = vadd.f32 %v900, %v1238
        %v1240 = vpop.f32.mrb[0].mxu0
        %1241 = vmatprep.mubr.f32.mxu0 0.0
        %1242 = vmatmul.mubr.f32.gmra.mrb[0].mxu0 %v870
        %v1243 = vpop.f32.mrb[0].mxu0
        %v1244 = vadd.f32 %v900, %v1243
        %v1245 = vpop.f32.mrb[0].mxu0
        %1246 = vmatprep.mubr.f32.mxu0 0.0
        %1247 = vmatmul.mubr.f32.gmra.mrb[0].mxu0 %v871
        %v1248 = vpop.f32.mrb[0].mxu0
        %v1249 = vadd.f32 %v900, %v1248
        %v1250 = vpop.f32.mrb[0].mxu0
        %1251 = vmatprep.mubr.f32.mxu0 0.0
        %1252 = vmatmul.mubr.f32.gmra.mrb[0].mxu0 %v872
        %v1253 = vpop.f32.mrb[0].mxu0
        %v1254 = vadd.f32 %v900, %v1253
        %v1255 = vpop.f32.mrb[0].mxu0
        %1256 = vmatprep.mubr.f32.mxu0 0.0
        %1257 = vmatmul.mubr.f32.gmra.mrb[0].mxu0 %v873
        %v1258 = vpop.f32.mrb[0].mxu0
        %v1259 = vadd.f32 %v900, %v1258
        %v1260 = vpop.f32.mrb[0].mxu0
        %1261 = vmatprep.mubr.f32.mxu0 0.0
        %1262 = vmatmul.mubr.f32.gmra.mrb[0].mxu0 %v874
        %v1263 = vpop.f32.mrb[0].mxu0
        %v1264 = vadd.f32 %v900, %v1263
        %v1265 = vpop.f32.mrb[0].mxu0
        %1266 = vmatprep.mubr.f32.mxu0 0.0
        %1267 = vmatmul.mubr.f32.gmra.mrb[0].mxu0 %v875
        %v1268 = vpop.f32.mrb[0].mxu0
        %v1269 = vadd.f32 %v900, %v1268
        %v1270 = vpop.f32.mrb[0].mxu0
        %1271 = vmatprep.mubr.f32.mxu0 0.0
        %1272 = vmatmul.mubr.f32.gmra.mrb[0].mxu0 %v876
        %v1273 = vpop.f32.mrb[0].mxu0
        %v1274 = vadd.f32 %v900, %v1273
        %v1275 = vpop.f32.mrb[0].mxu0
        %1276 = vmatprep.mubr.f32.mxu0 0.0
        %1277 = vmatmul.mubr.f32.gmra.mrb[0].mxu0 %v877
        %v1278 = vpop.f32.mrb[0].mxu0
        %v1279 = vadd.f32 %v900, %v1278
        %v1280 = vpop.f32.mrb[0].mxu0
        %1281 = vmatprep.mubr.f32.mxu0 0.0
        %1282 = vmatmul.mubr.f32.gmra.mrb[0].mxu0 %v878
        %v1283 = vpop.f32.mrb[0].mxu0
        %v1284 = vadd.f32 %v900, %v1283
        %v1285 = vpop.f32.mrb[0].mxu0
        %1286 = vdwg.mxu0
        %v1287 = vmax.f32 %v969, 0.0
        %v1288 = vmax.f32 %v974, 0.0
        %v1289 = vmax.f32 %v979, 0.0
        %v1290 = vmax.f32 %v984, 0.0
        %v1291 = vmax.f32 %v989, 0.0
        %v1292 = vmax.f32 %v994, 0.0
        %v1293 = vmax.f32 %v999, 0.0
        %v1294 = vmax.f32 %v1004, 0.0
        %v1295 = vmax.f32 %v1009, 0.0
        %v1296 = vmax.f32 %v1014, 0.0
        %v1297 = vmax.f32 %v1019, 0.0
        %v1298 = vmax.f32 %v1024, 0.0
        %v1299 = vmax.f32 %v1029, 0.0
        %v1300 = vmax.f32 %v1034, 0.0
        %v1301 = vmax.f32 %v1039, 0.0
        %v1302 = vmax.f32 %v1044, 0.0
        %v1303 = vmax.f32 %v1049, 0.0
        %v1304 = vmax.f32 %v1054, 0.0
        %v1305 = vmax.f32 %v1059, 0.0
        %v1306 = vmax.f32 %v1064, 0.0
        %v1307 = vmax.f32 %v1069, 0.0
        %v1308 = vmax.f32 %v1074, 0.0
        %v1309 = vmax.f32 %v1079, 0.0
        %v1310 = vmax.f32 %v1084, 0.0
        %v1311 = vmax.f32 %v1089, 0.0
        %v1312 = vmax.f32 %v1094, 0.0
        %v1313 = vmax.f32 %v1099, 0.0
        %v1314 = vmax.f32 %v1104, 0.0
        %v1315 = vmax.f32 %v1109, 0.0
        %v1316 = vmax.f32 %v1114, 0.0
        %v1317 = vmax.f32 %v1119, 0.0
        %v1318 = vmax.f32 %v1124, 0.0
        %v1319 = vmax.f32 %v1129, 0.0
        %v1320 = vmax.f32 %v1134, 0.0
        %v1321 = vmax.f32 %v1139, 0.0
        %v1322 = vmax.f32 %v1144, 0.0
        %v1323 = vmax.f32 %v1149, 0.0
        %v1324 = vmax.f32 %v1154, 0.0
        %v1325 = vmax.f32 %v1159, 0.0
        %v1326 = vmax.f32 %v1164, 0.0
        %v1327 = vmax.f32 %v1169, 0.0
        %v1328 = vmax.f32 %v1174, 0.0
        %v1329 = vmax.f32 %v1179, 0.0
        %v1330 = vmax.f32 %v1184, 0.0
        %v1331 = vmax.f32 %v1189, 0.0
        %v1332 = vmax.f32 %v1194, 0.0
        %v1333 = vmax.f32 %v1199, 0.0
        %v1334 = vmax.f32 %v1204, 0.0
        %v1335 = vmax.f32 %v1209, 0.0
        %v1336 = vmax.f32 %v1214, 0.0
        %v1337 = vmax.f32 %v1219, 0.0
        %v1338 = vmax.f32 %v1224, 0.0
        %v1339 = vmax.f32 %v1229, 0.0
        %v1340 = vmax.f32 %v1234, 0.0
        %v1341 = vmax.f32 %v1239, 0.0
        %v1342 = vmax.f32 %v1244, 0.0
        %v1343 = vmax.f32 %v1249, 0.0
        %v1344 = vmax.f32 %v1254, 0.0
        %v1345 = vmax.f32 %v1259, 0.0
        %v1346 = vmax.f32 %v1264, 0.0
        %v1347 = vmax.f32 %v1269, 0.0
        %v1348 = vmax.f32 %v1274, 0.0
        %v1349 = vmax.f32 %v1279, 0.0
        %v1350 = vmax.f32 %v1284, 0.0
        %v1351 = vld [vmem:[#allocation8] sm:$0xff]
        %v1352 = vld [vmem:[#allocation8 + $0x8] sm:$0xff]
        %v1353 = vld [vmem:[#allocation8 + $0x10] sm:$0xff]
        %v1354 = vld [vmem:[#allocation8 + $0x18] sm:$0xff]
        %v1355 = vld [vmem:[#allocation8 + $0x20] sm:$0xff]
        %v1356 = vld [vmem:[#allocation8 + $0x28] sm:$0xff]
        %v1357 = vld [vmem:[#allocation8 + $0x30] sm:$0xff]
        %v1358 = vld [vmem:[#allocation8 + $0x38] sm:$0xff]
        %v1359 = vld [vmem:[#allocation8 + $0x40] sm:$0xff]
        %v1360 = vld [vmem:[#allocation8 + $0x48] sm:$0xff]
        %v1361 = vld [vmem:[#allocation8 + $0x50] sm:$0xff]
        %v1362 = vld [vmem:[#allocation8 + $0x58] sm:$0xff]
        %v1363 = vld [vmem:[#allocation8 + $0x60] sm:$0xff]
        %v1364 = vld [vmem:[#allocation8 + $0x68] sm:$0xff]
        %v1365 = vld [vmem:[#allocation8 + $0x70] sm:$0xff]
        %v1366 = vld [vmem:[#allocation8 + $0x78] sm:$0xff]
        %v1367 = vld [vmem:[%s6] sm:$0x1]
        %v1369 = vlaneseq
        %v1370 = vshrl.u32 %v1369, 7
        %v1371 = vsub.s32 0, %v1370
        %v1372 = vrot.slane %v1367, %v1371
        %1374 = vmatprep.subr.mxu0 0.0
        %1375 = vmatpush1.msra.mxu0 %v1351
        %1376 = vmatprep.subr.mxu0 0.0
        %1377 = vmatpush1.msra.mxu0 %v1352
        %1378 = vmatprep.subr.mxu0 0.0
        %1379 = vmatpush1.msra.mxu0 %v1353
        %1380 = vmatprep.subr.mxu0 0.0
        %1381 = vmatpush1.msra.mxu0 %v1354
        %1382 = vmatprep.subr.mxu0 0.0
        %1383 = vmatpush1.msra.mxu0 %v1355
        %1384 = vmatprep.subr.mxu0 0.0
        %1385 = vmatpush1.msra.mxu0 %v1356
        %1386 = vmatprep.subr.mxu0 0.0
        %1387 = vmatpush1.msra.mxu0 %v1357
        %1388 = vmatprep.subr.mxu0 0.0
        %1389 = vmatpush1.msra.mxu0 %v1358
        %1390 = vmatprep.subr.mxu0 0.0
        %1391 = vmatpush1.msra.mxu0 %v1359
        %1392 = vmatprep.subr.mxu0 0.0
        %1393 = vmatpush1.msra.mxu0 %v1360
        %1394 = vmatprep.subr.mxu0 0.0
        %1395 = vmatpush1.msra.mxu0 %v1361
        %1396 = vmatprep.subr.mxu0 0.0
        %1397 = vmatpush1.msra.mxu0 %v1362
        %1398 = vmatprep.subr.mxu0 0.0
        %1399 = vmatpush1.msra.mxu0 %v1363
        %1400 = vmatprep.subr.mxu0 0.0
        %1401 = vmatpush1.msra.mxu0 %v1364
        %1402 = vmatprep.subr.mxu0 0.0
        %1403 = vmatpush1.msra.mxu0 %v1365
        %1404 = vmatprep.subr.mxu0 0.0
        %1405 = vmatpush1.msra.mxu0 %v1366
        %1406 = vmatprep.subr.mxu0 0.0
        %1407 = vmatpush1.msra.mxu0 0.0
        %1408 = vmatprep.subr.mxu0 0.0
        %1409 = vmatpush1.msra.mxu0 0.0
        %1410 = vmatprep.subr.mxu0 0.0
        %1411 = vmatpush1.msra.mxu0 0.0
        %1412 = vmatprep.subr.mxu0 0.0
        %1413 = vmatpush1.msra.mxu0 0.0
        %1414 = vmatprep.subr.mxu0 0.0
        %1415 = vmatpush1.msra.mxu0 0.0
        %1416 = vmatprep.subr.mxu0 0.0
        %1417 = vmatpush1.msra.mxu0 0.0
        %1418 = vmatprep.subr.mxu0 0.0
        %1419 = vmatpush1.msra.mxu0 0.0
        %1420 = vmatprep.subr.mxu0 0.0
        %1421 = vmatpush1.msra.mxu0 0.0
        %1422 = vmatprep.subr.mxu0 0.0
        %1423 = vmatpush1.msra.mxu0 0.0
        %1424 = vmatprep.subr.mxu0 0.0
        %1425 = vmatpush1.msra.mxu0 0.0
        %1426 = vmatprep.subr.mxu0 0.0
        %1427 = vmatpush1.msra.mxu0 0.0
        %1428 = vmatprep.subr.mxu0 0.0
        %1429 = vmatpush1.msra.mxu0 0.0
        %1430 = vmatprep.subr.mxu0 0.0
        %1431 = vmatpush1.msra.mxu0 0.0
        %1432 = vmatprep.subr.mxu0 0.0
        %1433 = vmatpush1.msra.mxu0 0.0
        %1434 = vmatprep.subr.mxu0 0.0
        %1435 = vmatpush1.msra.mxu0 0.0
        %1436 = vmatprep.subr.mxu0 0.0
        %1437 = vmatpush1.msra.mxu0 0.0
        %1438 = vmatprep.mubr.f32.mxu0 0.0
        %1439 = vmatmul.mubr.f32.gmra.mrb[0].mxu0 %v1287
        %v1440 = vpop.f32.mrb[0].mxu0
        %v1441 = vadd.f32 %v1372, %v1440
        %v1442 = vpop.f32.mrb[0].mxu0
        %1443 = vmatprep.mubr.f32.mxu0 0.0
        %1444 = vmatmul.mubr.f32.gmra.mrb[0].mxu0 %v1288
        %v1445 = vpop.f32.mrb[0].mxu0
        %v1446 = vadd.f32 %v1372, %v1445
        %v1447 = vpop.f32.mrb[0].mxu0
        %1448 = vmatprep.mubr.f32.mxu0 0.0
        %1449 = vmatmul.mubr.f32.gmra.mrb[0].mxu0 %v1289
        %v1450 = vpop.f32.mrb[0].mxu0
        %v1451 = vadd.f32 %v1372, %v1450
        %v1452 = vpop.f32.mrb[0].mxu0
        %1453 = vmatprep.mubr.f32.mxu0 0.0
        %1454 = vmatmul.mubr.f32.gmra.mrb[0].mxu0 %v1290
        %v1455 = vpop.f32.mrb[0].mxu0
        %v1456 = vadd.f32 %v1372, %v1455
        %v1457 = vpop.f32.mrb[0].mxu0
        %1458 = vmatprep.mubr.f32.mxu0 0.0
        %1459 = vmatmul.mubr.f32.gmra.mrb[0].mxu0 %v1291
        %v1460 = vpop.f32.mrb[0].mxu0
        %v1461 = vadd.f32 %v1372, %v1460
        %v1462 = vpop.f32.mrb[0].mxu0
        %1463 = vmatprep.mubr.f32.mxu0 0.0
        %1464 = vmatmul.mubr.f32.gmra.mrb[0].mxu0 %v1292
        %v1465 = vpop.f32.mrb[0].mxu0
        %v1466 = vadd.f32 %v1372, %v1465
        %v1467 = vpop.f32.mrb[0].mxu0
        %1468 = vmatprep.mubr.f32.mxu0 0.0
        %1469 = vmatmul.mubr.f32.gmra.mrb[0].mxu0 %v1293
        %v1470 = vpop.f32.mrb[0].mxu0
        %v1471 = vadd.f32 %v1372, %v1470
        %v1472 = vpop.f32.mrb[0].mxu0
        %1473 = vmatprep.mubr.f32.mxu0 0.0
        %1474 = vmatmul.mubr.f32.gmra.mrb[0].mxu0 %v1294
        %v1475 = vpop.f32.mrb[0].mxu0
        %v1476 = vadd.f32 %v1372, %v1475
        %v1477 = vpop.f32.mrb[0].mxu0
        %1478 = vmatprep.mubr.f32.mxu0 0.0
        %1479 = vmatmul.mubr.f32.gmra.mrb[0].mxu0 %v1295
        %v1480 = vpop.f32.mrb[0].mxu0
        %v1481 = vadd.f32 %v1372, %v1480
        %v1482 = vpop.f32.mrb[0].mxu0
        %1483 = vmatprep.mubr.f32.mxu0 0.0
        %1484 = vmatmul.mubr.f32.gmra.mrb[0].mxu0 %v1296
        %v1485 = vpop.f32.mrb[0].mxu0
        %v1486 = vadd.f32 %v1372, %v1485
        %v1487 = vpop.f32.mrb[0].mxu0
        %1488 = vmatprep.mubr.f32.mxu0 0.0
        %1489 = vmatmul.mubr.f32.gmra.mrb[0].mxu0 %v1297
        %v1490 = vpop.f32.mrb[0].mxu0
        %v1491 = vadd.f32 %v1372, %v1490
        %v1492 = vpop.f32.mrb[0].mxu0
        %1493 = vmatprep.mubr.f32.mxu0 0.0
        %1494 = vmatmul.mubr.f32.gmra.mrb[0].mxu0 %v1298
        %v1495 = vpop.f32.mrb[0].mxu0
        %v1496 = vadd.f32 %v1372, %v1495
        %v1497 = vpop.f32.mrb[0].mxu0
        %1498 = vmatprep.mubr.f32.mxu0 0.0
        %1499 = vmatmul.mubr.f32.gmra.mrb[0].mxu0 %v1299
        %v1500 = vpop.f32.mrb[0].mxu0
        %v1501 = vadd.f32 %v1372, %v1500
        %v1502 = vpop.f32.mrb[0].mxu0
        %1503 = vmatprep.mubr.f32.mxu0 0.0
        %1504 = vmatmul.mubr.f32.gmra.mrb[0].mxu0 %v1300
        %v1505 = vpop.f32.mrb[0].mxu0
        %v1506 = vadd.f32 %v1372, %v1505
        %v1507 = vpop.f32.mrb[0].mxu0
        %1508 = vmatprep.mubr.f32.mxu0 0.0
        %1509 = vmatmul.mubr.f32.gmra.mrb[0].mxu0 %v1301
        %v1510 = vpop.f32.mrb[0].mxu0
        %v1511 = vadd.f32 %v1372, %v1510
        %v1512 = vpop.f32.mrb[0].mxu0
        %1513 = vmatprep.mubr.f32.mxu0 0.0
        %1514 = vmatmul.mubr.f32.gmra.mrb[0].mxu0 %v1302
        %v1515 = vpop.f32.mrb[0].mxu0
        %v1516 = vadd.f32 %v1372, %v1515
        %v1517 = vpop.f32.mrb[0].mxu0
        %1518 = vmatprep.mubr.f32.mxu0 0.0
        %1519 = vmatmul.mubr.f32.gmra.mrb[0].mxu0 %v1303
        %v1520 = vpop.f32.mrb[0].mxu0
        %v1521 = vadd.f32 %v1372, %v1520
        %v1522 = vpop.f32.mrb[0].mxu0
        %1523 = vmatprep.mubr.f32.mxu0 0.0
        %1524 = vmatmul.mubr.f32.gmra.mrb[0].mxu0 %v1304
        %v1525 = vpop.f32.mrb[0].mxu0
        %v1526 = vadd.f32 %v1372, %v1525
        %v1527 = vpop.f32.mrb[0].mxu0
        %1528 = vmatprep.mubr.f32.mxu0 0.0
        %1529 = vmatmul.mubr.f32.gmra.mrb[0].mxu0 %v1305
        %v1530 = vpop.f32.mrb[0].mxu0
        %v1531 = vadd.f32 %v1372, %v1530
        %v1532 = vpop.f32.mrb[0].mxu0
        %1533 = vmatprep.mubr.f32.mxu0 0.0
        %1534 = vmatmul.mubr.f32.gmra.mrb[0].mxu0 %v1306
        %v1535 = vpop.f32.mrb[0].mxu0
        %v1536 = vadd.f32 %v1372, %v1535
        %v1537 = vpop.f32.mrb[0].mxu0
        %1538 = vmatprep.mubr.f32.mxu0 0.0
        %1539 = vmatmul.mubr.f32.gmra.mrb[0].mxu0 %v1307
        %v1540 = vpop.f32.mrb[0].mxu0
        %v1541 = vadd.f32 %v1372, %v1540
        %v1542 = vpop.f32.mrb[0].mxu0
        %1543 = vmatprep.mubr.f32.mxu0 0.0
        %1544 = vmatmul.mubr.f32.gmra.mrb[0].mxu0 %v1308
        %v1545 = vpop.f32.mrb[0].mxu0
        %v1546 = vadd.f32 %v1372, %v1545
        %v1547 = vpop.f32.mrb[0].mxu0
        %1548 = vmatprep.mubr.f32.mxu0 0.0
        %1549 = vmatmul.mubr.f32.gmra.mrb[0].mxu0 %v1309
        %v1550 = vpop.f32.mrb[0].mxu0
        %v1551 = vadd.f32 %v1372, %v1550
        %v1552 = vpop.f32.mrb[0].mxu0
        %1553 = vmatprep.mubr.f32.mxu0 0.0
        %1554 = vmatmul.mubr.f32.gmra.mrb[0].mxu0 %v1310
        %v1555 = vpop.f32.mrb[0].mxu0
        %v1556 = vadd.f32 %v1372, %v1555
        %v1557 = vpop.f32.mrb[0].mxu0
        %1558 = vmatprep.mubr.f32.mxu0 0.0
        %1559 = vmatmul.mubr.f32.gmra.mrb[0].mxu0 %v1311
        %v1560 = vpop.f32.mrb[0].mxu0
        %v1561 = vadd.f32 %v1372, %v1560
        %v1562 = vpop.f32.mrb[0].mxu0
        %1563 = vmatprep.mubr.f32.mxu0 0.0
        %1564 = vmatmul.mubr.f32.gmra.mrb[0].mxu0 %v1312
        %v1565 = vpop.f32.mrb[0].mxu0
        %v1566 = vadd.f32 %v1372, %v1565
        %v1567 = vpop.f32.mrb[0].mxu0
        %1568 = vmatprep.mubr.f32.mxu0 0.0
        %1569 = vmatmul.mubr.f32.gmra.mrb[0].mxu0 %v1313
        %v1570 = vpop.f32.mrb[0].mxu0
        %v1571 = vadd.f32 %v1372, %v1570
        %v1572 = vpop.f32.mrb[0].mxu0
        %1573 = vmatprep.mubr.f32.mxu0 0.0
        %1574 = vmatmul.mubr.f32.gmra.mrb[0].mxu0 %v1314
        %v1575 = vpop.f32.mrb[0].mxu0
        %v1576 = vadd.f32 %v1372, %v1575
        %v1577 = vpop.f32.mrb[0].mxu0
        %1578 = vmatprep.mubr.f32.mxu0 0.0
        %1579 = vmatmul.mubr.f32.gmra.mrb[0].mxu0 %v1315
        %v1580 = vpop.f32.mrb[0].mxu0
        %v1581 = vadd.f32 %v1372, %v1580
        %v1582 = vpop.f32.mrb[0].mxu0
        %1583 = vmatprep.mubr.f32.mxu0 0.0
        %1584 = vmatmul.mubr.f32.gmra.mrb[0].mxu0 %v1316
        %v1585 = vpop.f32.mrb[0].mxu0
        %v1586 = vadd.f32 %v1372, %v1585
        %v1587 = vpop.f32.mrb[0].mxu0
        %1588 = vmatprep.mubr.f32.mxu0 0.0
        %1589 = vmatmul.mubr.f32.gmra.mrb[0].mxu0 %v1317
        %v1590 = vpop.f32.mrb[0].mxu0
        %v1591 = vadd.f32 %v1372, %v1590
        %v1592 = vpop.f32.mrb[0].mxu0
        %1593 = vmatprep.mubr.f32.mxu0 0.0
        %1594 = vmatmul.mubr.f32.gmra.mrb[0].mxu0 %v1318
        %v1595 = vpop.f32.mrb[0].mxu0
        %v1596 = vadd.f32 %v1372, %v1595
        %v1597 = vpop.f32.mrb[0].mxu0
        %1598 = vmatprep.mubr.f32.mxu0 0.0
        %1599 = vmatmul.mubr.f32.gmra.mrb[0].mxu0 %v1319
        %v1600 = vpop.f32.mrb[0].mxu0
        %v1601 = vadd.f32 %v1372, %v1600
        %v1602 = vpop.f32.mrb[0].mxu0
        %1603 = vmatprep.mubr.f32.mxu0 0.0
        %1604 = vmatmul.mubr.f32.gmra.mrb[0].mxu0 %v1320
        %v1605 = vpop.f32.mrb[0].mxu0
        %v1606 = vadd.f32 %v1372, %v1605
        %v1607 = vpop.f32.mrb[0].mxu0
        %1608 = vmatprep.mubr.f32.mxu0 0.0
        %1609 = vmatmul.mubr.f32.gmra.mrb[0].mxu0 %v1321
        %v1610 = vpop.f32.mrb[0].mxu0
        %v1611 = vadd.f32 %v1372, %v1610
        %v1612 = vpop.f32.mrb[0].mxu0
        %1613 = vmatprep.mubr.f32.mxu0 0.0
        %1614 = vmatmul.mubr.f32.gmra.mrb[0].mxu0 %v1322
        %v1615 = vpop.f32.mrb[0].mxu0
        %v1616 = vadd.f32 %v1372, %v1615
        %v1617 = vpop.f32.mrb[0].mxu0
        %1618 = vmatprep.mubr.f32.mxu0 0.0
        %1619 = vmatmul.mubr.f32.gmra.mrb[0].mxu0 %v1323
        %v1620 = vpop.f32.mrb[0].mxu0
        %v1621 = vadd.f32 %v1372, %v1620
        %v1622 = vpop.f32.mrb[0].mxu0
        %1623 = vmatprep.mubr.f32.mxu0 0.0
        %1624 = vmatmul.mubr.f32.gmra.mrb[0].mxu0 %v1324
        %v1625 = vpop.f32.mrb[0].mxu0
        %v1626 = vadd.f32 %v1372, %v1625
        %v1627 = vpop.f32.mrb[0].mxu0
        %1628 = vmatprep.mubr.f32.mxu0 0.0
        %1629 = vmatmul.mubr.f32.gmra.mrb[0].mxu0 %v1325
        %v1630 = vpop.f32.mrb[0].mxu0
        %v1631 = vadd.f32 %v1372, %v1630
        %v1632 = vpop.f32.mrb[0].mxu0
        %1633 = vmatprep.mubr.f32.mxu0 0.0
        %1634 = vmatmul.mubr.f32.gmra.mrb[0].mxu0 %v1326
        %v1635 = vpop.f32.mrb[0].mxu0
        %v1636 = vadd.f32 %v1372, %v1635
        %v1637 = vpop.f32.mrb[0].mxu0
        %1638 = vmatprep.mubr.f32.mxu0 0.0
        %1639 = vmatmul.mubr.f32.gmra.mrb[0].mxu0 %v1327
        %v1640 = vpop.f32.mrb[0].mxu0
        %v1641 = vadd.f32 %v1372, %v1640
        %v1642 = vpop.f32.mrb[0].mxu0
        %1643 = vmatprep.mubr.f32.mxu0 0.0
        %1644 = vmatmul.mubr.f32.gmra.mrb[0].mxu0 %v1328
        %v1645 = vpop.f32.mrb[0].mxu0
        %v1646 = vadd.f32 %v1372, %v1645
        %v1647 = vpop.f32.mrb[0].mxu0
        %1648 = vmatprep.mubr.f32.mxu0 0.0
        %1649 = vmatmul.mubr.f32.gmra.mrb[0].mxu0 %v1329
        %v1650 = vpop.f32.mrb[0].mxu0
        %v1651 = vadd.f32 %v1372, %v1650
        %v1652 = vpop.f32.mrb[0].mxu0
        %1653 = vmatprep.mubr.f32.mxu0 0.0
        %1654 = vmatmul.mubr.f32.gmra.mrb[0].mxu0 %v1330
        %v1655 = vpop.f32.mrb[0].mxu0
        %v1656 = vadd.f32 %v1372, %v1655
        %v1657 = vpop.f32.mrb[0].mxu0
        %1658 = vmatprep.mubr.f32.mxu0 0.0
        %1659 = vmatmul.mubr.f32.gmra.mrb[0].mxu0 %v1331
        %v1660 = vpop.f32.mrb[0].mxu0
        %v1661 = vadd.f32 %v1372, %v1660
        %v1662 = vpop.f32.mrb[0].mxu0
        %1663 = vmatprep.mubr.f32.mxu0 0.0
        %1664 = vmatmul.mubr.f32.gmra.mrb[0].mxu0 %v1332
        %v1665 = vpop.f32.mrb[0].mxu0
        %v1666 = vadd.f32 %v1372, %v1665
        %v1667 = vpop.f32.mrb[0].mxu0
        %1668 = vmatprep.mubr.f32.mxu0 0.0
        %1669 = vmatmul.mubr.f32.gmra.mrb[0].mxu0 %v1333
        %v1670 = vpop.f32.mrb[0].mxu0
        %v1671 = vadd.f32 %v1372, %v1670
        %v1672 = vpop.f32.mrb[0].mxu0
        %1673 = vmatprep.mubr.f32.mxu0 0.0
        %1674 = vmatmul.mubr.f32.gmra.mrb[0].mxu0 %v1334
        %v1675 = vpop.f32.mrb[0].mxu0
        %v1676 = vadd.f32 %v1372, %v1675
        %v1677 = vpop.f32.mrb[0].mxu0
        %1678 = vmatprep.mubr.f32.mxu0 0.0
        %1679 = vmatmul.mubr.f32.gmra.mrb[0].mxu0 %v1335
        %v1680 = vpop.f32.mrb[0].mxu0
        %v1681 = vadd.f32 %v1372, %v1680
        %v1682 = vpop.f32.mrb[0].mxu0
        %1683 = vmatprep.mubr.f32.mxu0 0.0
        %1684 = vmatmul.mubr.f32.gmra.mrb[0].mxu0 %v1336
        %v1685 = vpop.f32.mrb[0].mxu0
        %v1686 = vadd.f32 %v1372, %v1685
        %v1687 = vpop.f32.mrb[0].mxu0
        %1688 = vmatprep.mubr.f32.mxu0 0.0
        %1689 = vmatmul.mubr.f32.gmra.mrb[0].mxu0 %v1337
        %v1690 = vpop.f32.mrb[0].mxu0
        %v1691 = vadd.f32 %v1372, %v1690
        %v1692 = vpop.f32.mrb[0].mxu0
        %1693 = vmatprep.mubr.f32.mxu0 0.0
        %1694 = vmatmul.mubr.f32.gmra.mrb[0].mxu0 %v1338
        %v1695 = vpop.f32.mrb[0].mxu0
        %v1696 = vadd.f32 %v1372, %v1695
        %v1697 = vpop.f32.mrb[0].mxu0
        %1698 = vmatprep.mubr.f32.mxu0 0.0
        %1699 = vmatmul.mubr.f32.gmra.mrb[0].mxu0 %v1339
        %v1700 = vpop.f32.mrb[0].mxu0
        %v1701 = vadd.f32 %v1372, %v1700
        %v1702 = vpop.f32.mrb[0].mxu0
        %1703 = vmatprep.mubr.f32.mxu0 0.0
        %1704 = vmatmul.mubr.f32.gmra.mrb[0].mxu0 %v1340
        %v1705 = vpop.f32.mrb[0].mxu0
        %v1706 = vadd.f32 %v1372, %v1705
        %v1707 = vpop.f32.mrb[0].mxu0
        %1708 = vmatprep.mubr.f32.mxu0 0.0
        %1709 = vmatmul.mubr.f32.gmra.mrb[0].mxu0 %v1341
        %v1710 = vpop.f32.mrb[0].mxu0
        %v1711 = vadd.f32 %v1372, %v1710
        %v1712 = vpop.f32.mrb[0].mxu0
        %1713 = vmatprep.mubr.f32.mxu0 0.0
        %1714 = vmatmul.mubr.f32.gmra.mrb[0].mxu0 %v1342
        %v1715 = vpop.f32.mrb[0].mxu0
        %v1716 = vadd.f32 %v1372, %v1715
        %v1717 = vpop.f32.mrb[0].mxu0
        %1718 = vmatprep.mubr.f32.mxu0 0.0
        %1719 = vmatmul.mubr.f32.gmra.mrb[0].mxu0 %v1343
        %v1720 = vpop.f32.mrb[0].mxu0
        %v1721 = vadd.f32 %v1372, %v1720
        %v1722 = vpop.f32.mrb[0].mxu0
        %1723 = vmatprep.mubr.f32.mxu0 0.0
        %1724 = vmatmul.mubr.f32.gmra.mrb[0].mxu0 %v1344
        %v1725 = vpop.f32.mrb[0].mxu0
        %v1726 = vadd.f32 %v1372, %v1725
        %v1727 = vpop.f32.mrb[0].mxu0
        %1728 = vmatprep.mubr.f32.mxu0 0.0
        %1729 = vmatmul.mubr.f32.gmra.mrb[0].mxu0 %v1345
        %v1730 = vpop.f32.mrb[0].mxu0
        %v1731 = vadd.f32 %v1372, %v1730
        %v1732 = vpop.f32.mrb[0].mxu0
        %1733 = vmatprep.mubr.f32.mxu0 0.0
        %1734 = vmatmul.mubr.f32.gmra.mrb[0].mxu0 %v1346
        %v1735 = vpop.f32.mrb[0].mxu0
        %v1736 = vadd.f32 %v1372, %v1735
        %v1737 = vpop.f32.mrb[0].mxu0
        %1738 = vmatprep.mubr.f32.mxu0 0.0
        %1739 = vmatmul.mubr.f32.gmra.mrb[0].mxu0 %v1347
        %v1740 = vpop.f32.mrb[0].mxu0
        %v1741 = vadd.f32 %v1372, %v1740
        %v1742 = vpop.f32.mrb[0].mxu0
        %1743 = vmatprep.mubr.f32.mxu0 0.0
        %1744 = vmatmul.mubr.f32.gmra.mrb[0].mxu0 %v1348
        %v1745 = vpop.f32.mrb[0].mxu0
        %v1746 = vadd.f32 %v1372, %v1745
        %v1747 = vpop.f32.mrb[0].mxu0
        %1748 = vmatprep.mubr.f32.mxu0 0.0
        %1749 = vmatmul.mubr.f32.gmra.mrb[0].mxu0 %v1349
        %v1750 = vpop.f32.mrb[0].mxu0
        %v1751 = vadd.f32 %v1372, %v1750
        %v1752 = vpop.f32.mrb[0].mxu0
        %1753 = vmatprep.mubr.f32.mxu0 0.0
        %1754 = vmatmul.mubr.f32.gmra.mrb[0].mxu0 %v1350
        %v1755 = vpop.f32.mrb[0].mxu0
        %v1756 = vadd.f32 %v1372, %v1755
        %v1757 = vpop.f32.mrb[0].mxu0
        %1758 = vdwg.mxu0
        %v1759 = vxor.u32 %v1441, 2147483648
        %v1760 = vxor.u32 %v1446, 2147483648
        %v1761 = vxor.u32 %v1451, 2147483648
        %v1762 = vxor.u32 %v1456, 2147483648
        %v1763 = vxor.u32 %v1461, 2147483648
        %v1764 = vxor.u32 %v1466, 2147483648
        %v1765 = vxor.u32 %v1471, 2147483648
        %v1766 = vxor.u32 %v1476, 2147483648
        %v1767 = vxor.u32 %v1481, 2147483648
        %v1768 = vxor.u32 %v1486, 2147483648
        %v1769 = vxor.u32 %v1491, 2147483648
        %v1770 = vxor.u32 %v1496, 2147483648
        %v1771 = vxor.u32 %v1501, 2147483648
        %v1772 = vxor.u32 %v1506, 2147483648
        %v1773 = vxor.u32 %v1511, 2147483648
        %v1774 = vxor.u32 %v1516, 2147483648
        %v1775 = vxor.u32 %v1521, 2147483648
        %v1776 = vxor.u32 %v1526, 2147483648
        %v1777 = vxor.u32 %v1531, 2147483648
        %v1778 = vxor.u32 %v1536, 2147483648
        %v1779 = vxor.u32 %v1541, 2147483648
        %v1780 = vxor.u32 %v1546, 2147483648
        %v1781 = vxor.u32 %v1551, 2147483648
        %v1782 = vxor.u32 %v1556, 2147483648
        %v1783 = vxor.u32 %v1561, 2147483648
        %v1784 = vxor.u32 %v1566, 2147483648
        %v1785 = vxor.u32 %v1571, 2147483648
        %v1786 = vxor.u32 %v1576, 2147483648
        %v1787 = vxor.u32 %v1581, 2147483648
        %v1788 = vxor.u32 %v1586, 2147483648
        %v1789 = vxor.u32 %v1591, 2147483648
        %v1790 = vxor.u32 %v1596, 2147483648
        %v1791 = vxor.u32 %v1601, 2147483648
        %v1792 = vxor.u32 %v1606, 2147483648
        %v1793 = vxor.u32 %v1611, 2147483648
        %v1794 = vxor.u32 %v1616, 2147483648
        %v1795 = vxor.u32 %v1621, 2147483648
        %v1796 = vxor.u32 %v1626, 2147483648
        %v1797 = vxor.u32 %v1631, 2147483648
        %v1798 = vxor.u32 %v1636, 2147483648
        %v1799 = vxor.u32 %v1641, 2147483648
        %v1800 = vxor.u32 %v1646, 2147483648
        %v1801 = vxor.u32 %v1651, 2147483648
        %v1802 = vxor.u32 %v1656, 2147483648
        %v1803 = vxor.u32 %v1661, 2147483648
        %v1804 = vxor.u32 %v1666, 2147483648
        %v1805 = vxor.u32 %v1671, 2147483648
        %v1806 = vxor.u32 %v1676, 2147483648
        %v1807 = vxor.u32 %v1681, 2147483648
        %v1808 = vxor.u32 %v1686, 2147483648
        %v1809 = vxor.u32 %v1691, 2147483648
        %v1810 = vxor.u32 %v1696, 2147483648
        %v1811 = vxor.u32 %v1701, 2147483648
        %v1812 = vxor.u32 %v1706, 2147483648
        %v1813 = vxor.u32 %v1711, 2147483648
        %v1814 = vxor.u32 %v1716, 2147483648
        %v1815 = vxor.u32 %v1721, 2147483648
        %v1816 = vxor.u32 %v1726, 2147483648
        %v1817 = vxor.u32 %v1731, 2147483648
        %v1818 = vxor.u32 %v1736, 2147483648
        %v1819 = vxor.u32 %v1741, 2147483648
        %v1820 = vxor.u32 %v1746, 2147483648
        %v1821 = vxor.u32 %v1751, 2147483648
        %v1822 = vxor.u32 %v1756, 2147483648
        %v1823 = vmul.f32 %v1759, 1.442695
        %v1824 = vpow.pop %v1823
        %v1825 = vmul.f32 %v1760, 1.442695
        %v1826 = vpow.pop %v1825
        %v1827 = vmul.f32 %v1761, 1.442695
        %v1828 = vpow.pop %v1827
        %v1829 = vmul.f32 %v1762, 1.442695
        %v1830 = vpow.pop %v1829
        %v1831 = vmul.f32 %v1763, 1.442695
        %v1832 = vpow.pop %v1831
        %v1833 = vmul.f32 %v1764, 1.442695
        %v1834 = vpow.pop %v1833
        %v1835 = vmul.f32 %v1765, 1.442695
        %v1836 = vpow.pop %v1835
        %v1837 = vmul.f32 %v1766, 1.442695
        %v1838 = vpow.pop %v1837
        %v1839 = vmul.f32 %v1767, 1.442695
        %v1840 = vpow.pop %v1839
        %v1841 = vmul.f32 %v1768, 1.442695
        %v1842 = vpow.pop %v1841
        %v1843 = vmul.f32 %v1769, 1.442695
        %v1844 = vpow.pop %v1843
        %v1845 = vmul.f32 %v1770, 1.442695
        %v1846 = vpow.pop %v1845
        %v1847 = vmul.f32 %v1771, 1.442695
        %v1848 = vpow.pop %v1847
        %v1849 = vmul.f32 %v1772, 1.442695
        %v1850 = vpow.pop %v1849
        %v1851 = vmul.f32 %v1773, 1.442695
        %v1852 = vpow.pop %v1851
        %v1853 = vmul.f32 %v1774, 1.442695
        %v1854 = vpow.pop %v1853
        %v1855 = vmul.f32 %v1775, 1.442695
        %v1856 = vpow.pop %v1855
        %v1857 = vmul.f32 %v1776, 1.442695
        %v1858 = vpow.pop %v1857
        %v1859 = vmul.f32 %v1777, 1.442695
        %v1860 = vpow.pop %v1859
        %v1861 = vmul.f32 %v1778, 1.442695
        %v1862 = vpow.pop %v1861
        %v1863 = vmul.f32 %v1779, 1.442695
        %v1864 = vpow.pop %v1863
        %v1865 = vmul.f32 %v1780, 1.442695
        %v1866 = vpow.pop %v1865
        %v1867 = vmul.f32 %v1781, 1.442695
        %v1868 = vpow.pop %v1867
        %v1869 = vmul.f32 %v1782, 1.442695
        %v1870 = vpow.pop %v1869
        %v1871 = vmul.f32 %v1783, 1.442695
        %v1872 = vpow.pop %v1871
        %v1873 = vmul.f32 %v1784, 1.442695
        %v1874 = vpow.pop %v1873
        %v1875 = vmul.f32 %v1785, 1.442695
        %v1876 = vpow.pop %v1875
        %v1877 = vmul.f32 %v1786, 1.442695
        %v1878 = vpow.pop %v1877
        %v1879 = vmul.f32 %v1787, 1.442695
        %v1880 = vpow.pop %v1879
        %v1881 = vmul.f32 %v1788, 1.442695
        %v1882 = vpow.pop %v1881
        %v1883 = vmul.f32 %v1789, 1.442695
        %v1884 = vpow.pop %v1883
        %v1885 = vmul.f32 %v1790, 1.442695
        %v1886 = vpow.pop %v1885
        %v1887 = vmul.f32 %v1791, 1.442695
        %v1888 = vpow.pop %v1887
        %v1889 = vmul.f32 %v1792, 1.442695
        %v1890 = vpow.pop %v1889
        %v1891 = vmul.f32 %v1793, 1.442695
        %v1892 = vpow.pop %v1891
        %v1893 = vmul.f32 %v1794, 1.442695
        %v1894 = vpow.pop %v1893
        %v1895 = vmul.f32 %v1795, 1.442695
        %v1896 = vpow.pop %v1895
        %v1897 = vmul.f32 %v1796, 1.442695
        %v1898 = vpow.pop %v1897
        %v1899 = vmul.f32 %v1797, 1.442695
        %v1900 = vpow.pop %v1899
        %v1901 = vmul.f32 %v1798, 1.442695
        %v1902 = vpow.pop %v1901
        %v1903 = vmul.f32 %v1799, 1.442695
        %v1904 = vpow.pop %v1903
        %v1905 = vmul.f32 %v1800, 1.442695
        %v1906 = vpow.pop %v1905
        %v1907 = vmul.f32 %v1801, 1.442695
        %v1908 = vpow.pop %v1907
        %v1909 = vmul.f32 %v1802, 1.442695
        %v1910 = vpow.pop %v1909
        %v1911 = vmul.f32 %v1803, 1.442695
        %v1912 = vpow.pop %v1911
        %v1913 = vmul.f32 %v1804, 1.442695
        %v1914 = vpow.pop %v1913
        %v1915 = vmul.f32 %v1805, 1.442695
        %v1916 = vpow.pop %v1915
        %v1917 = vmul.f32 %v1806, 1.442695
        %v1918 = vpow.pop %v1917
        %v1919 = vmul.f32 %v1807, 1.442695
        %v1920 = vpow.pop %v1919
        %v1921 = vmul.f32 %v1808, 1.442695
        %v1922 = vpow.pop %v1921
        %v1923 = vmul.f32 %v1809, 1.442695
        %v1924 = vpow.pop %v1923
        %v1925 = vmul.f32 %v1810, 1.442695
        %v1926 = vpow.pop %v1925
        %v1927 = vmul.f32 %v1811, 1.442695
        %v1928 = vpow.pop %v1927
        %v1929 = vmul.f32 %v1812, 1.442695
        %v1930 = vpow.pop %v1929
        %v1931 = vmul.f32 %v1813, 1.442695
        %v1932 = vpow.pop %v1931
        %v1933 = vmul.f32 %v1814, 1.442695
        %v1934 = vpow.pop %v1933
        %v1935 = vmul.f32 %v1815, 1.442695
        %v1936 = vpow.pop %v1935
        %v1937 = vmul.f32 %v1816, 1.442695
        %v1938 = vpow.pop %v1937
        %v1939 = vmul.f32 %v1817, 1.442695
        %v1940 = vpow.pop %v1939
        %v1941 = vmul.f32 %v1818, 1.442695
        %v1942 = vpow.pop %v1941
        %v1943 = vmul.f32 %v1819, 1.442695
        %v1944 = vpow.pop %v1943
        %v1945 = vmul.f32 %v1820, 1.442695
        %v1946 = vpow.pop %v1945
        %v1947 = vmul.f32 %v1821, 1.442695
        %v1948 = vpow.pop %v1947
        %v1949 = vmul.f32 %v1822, 1.442695
        %v1950 = vpow.pop %v1949
        %v1951 = vadd.f32 %v1824, 1.0
        %v1952 = vadd.f32 %v1826, 1.0
        %v1953 = vadd.f32 %v1828, 1.0
        %v1954 = vadd.f32 %v1830, 1.0
        %v1955 = vadd.f32 %v1832, 1.0
        %v1956 = vadd.f32 %v1834, 1.0
        %v1957 = vadd.f32 %v1836, 1.0
        %v1958 = vadd.f32 %v1838, 1.0
        %v1959 = vadd.f32 %v1840, 1.0
        %v1960 = vadd.f32 %v1842, 1.0
        %v1961 = vadd.f32 %v1844, 1.0
        %v1962 = vadd.f32 %v1846, 1.0
        %v1963 = vadd.f32 %v1848, 1.0
        %v1964 = vadd.f32 %v1850, 1.0
        %v1965 = vadd.f32 %v1852, 1.0
        %v1966 = vadd.f32 %v1854, 1.0
        %v1967 = vadd.f32 %v1856, 1.0
        %v1968 = vadd.f32 %v1858, 1.0
        %v1969 = vadd.f32 %v1860, 1.0
        %v1970 = vadd.f32 %v1862, 1.0
        %v1971 = vadd.f32 %v1864, 1.0
        %v1972 = vadd.f32 %v1866, 1.0
        %v1973 = vadd.f32 %v1868, 1.0
        %v1974 = vadd.f32 %v1870, 1.0
        %v1975 = vadd.f32 %v1872, 1.0
        %v1976 = vadd.f32 %v1874, 1.0
        %v1977 = vadd.f32 %v1876, 1.0
        %v1978 = vadd.f32 %v1878, 1.0
        %v1979 = vadd.f32 %v1880, 1.0
        %v1980 = vadd.f32 %v1882, 1.0
        %v1981 = vadd.f32 %v1884, 1.0
        %v1982 = vadd.f32 %v1886, 1.0
        %v1983 = vadd.f32 %v1888, 1.0
        %v1984 = vadd.f32 %v1890, 1.0
        %v1985 = vadd.f32 %v1892, 1.0
        %v1986 = vadd.f32 %v1894, 1.0
        %v1987 = vadd.f32 %v1896, 1.0
        %v1988 = vadd.f32 %v1898, 1.0
        %v1989 = vadd.f32 %v1900, 1.0
        %v1990 = vadd.f32 %v1902, 1.0
        %v1991 = vadd.f32 %v1904, 1.0
        %v1992 = vadd.f32 %v1906, 1.0
        %v1993 = vadd.f32 %v1908, 1.0
        %v1994 = vadd.f32 %v1910, 1.0
        %v1995 = vadd.f32 %v1912, 1.0
        %v1996 = vadd.f32 %v1914, 1.0
        %v1997 = vadd.f32 %v1916, 1.0
        %v1998 = vadd.f32 %v1918, 1.0
        %v1999 = vadd.f32 %v1920, 1.0
        %v2000 = vadd.f32 %v1922, 1.0
        %v2001 = vadd.f32 %v1924, 1.0
        %v2002 = vadd.f32 %v1926, 1.0
        %v2003 = vadd.f32 %v1928, 1.0
        %v2004 = vadd.f32 %v1930, 1.0
        %v2005 = vadd.f32 %v1932, 1.0
        %v2006 = vadd.f32 %v1934, 1.0
        %v2007 = vadd.f32 %v1936, 1.0
        %v2008 = vadd.f32 %v1938, 1.0
        %v2009 = vadd.f32 %v1940, 1.0
        %v2010 = vadd.f32 %v1942, 1.0
        %v2011 = vadd.f32 %v1944, 1.0
        %v2012 = vadd.f32 %v1946, 1.0
        %v2013 = vadd.f32 %v1948, 1.0
        %v2014 = vadd.f32 %v1950, 1.0
        %v2015 = vrcp.pop %v1951
        %v2016 = vmul.f32 1.0, %v2015
        %v2017 = vrcp.pop %v1952
        %v2018 = vmul.f32 1.0, %v2017
        %v2019 = vrcp.pop %v1953
        %v2020 = vmul.f32 1.0, %v2019
        %v2021 = vrcp.pop %v1954
        %v2022 = vmul.f32 1.0, %v2021
        %v2023 = vrcp.pop %v1955
        %v2024 = vmul.f32 1.0, %v2023
        %v2025 = vrcp.pop %v1956
        %v2026 = vmul.f32 1.0, %v2025
        %v2027 = vrcp.pop %v1957
        %v2028 = vmul.f32 1.0, %v2027
        %v2029 = vrcp.pop %v1958
        %v2030 = vmul.f32 1.0, %v2029
        %v2031 = vrcp.pop %v1959
        %v2032 = vmul.f32 1.0, %v2031
        %v2033 = vrcp.pop %v1960
        %v2034 = vmul.f32 1.0, %v2033
        %v2035 = vrcp.pop %v1961
        %v2036 = vmul.f32 1.0, %v2035
        %v2037 = vrcp.pop %v1962
        %v2038 = vmul.f32 1.0, %v2037
        %v2039 = vrcp.pop %v1963
        %v2040 = vmul.f32 1.0, %v2039
        %v2041 = vrcp.pop %v1964
        %v2042 = vmul.f32 1.0, %v2041
        %v2043 = vrcp.pop %v1965
        %v2044 = vmul.f32 1.0, %v2043
        %v2045 = vrcp.pop %v1966
        %v2046 = vmul.f32 1.0, %v2045
        %v2047 = vrcp.pop %v1967
        %v2048 = vmul.f32 1.0, %v2047
        %v2049 = vrcp.pop %v1968
        %v2050 = vmul.f32 1.0, %v2049
        %v2051 = vrcp.pop %v1969
        %v2052 = vmul.f32 1.0, %v2051
        %v2053 = vrcp.pop %v1970
        %v2054 = vmul.f32 1.0, %v2053
        %v2055 = vrcp.pop %v1971
        %v2056 = vmul.f32 1.0, %v2055
        %v2057 = vrcp.pop %v1972
        %v2058 = vmul.f32 1.0, %v2057
        %v2059 = vrcp.pop %v1973
        %v2060 = vmul.f32 1.0, %v2059
        %v2061 = vrcp.pop %v1974
        %v2062 = vmul.f32 1.0, %v2061
        %v2063 = vrcp.pop %v1975
        %v2064 = vmul.f32 1.0, %v2063
        %v2065 = vrcp.pop %v1976
        %v2066 = vmul.f32 1.0, %v2065
        %v2067 = vrcp.pop %v1977
        %v2068 = vmul.f32 1.0, %v2067
        %v2069 = vrcp.pop %v1978
        %v2070 = vmul.f32 1.0, %v2069
        %v2071 = vrcp.pop %v1979
        %v2072 = vmul.f32 1.0, %v2071
        %v2073 = vrcp.pop %v1980
        %v2074 = vmul.f32 1.0, %v2073
        %v2075 = vrcp.pop %v1981
        %v2076 = vmul.f32 1.0, %v2075
        %v2077 = vrcp.pop %v1982
        %v2078 = vmul.f32 1.0, %v2077
        %v2079 = vrcp.pop %v1983
        %v2080 = vmul.f32 1.0, %v2079
        %v2081 = vrcp.pop %v1984
        %v2082 = vmul.f32 1.0, %v2081
        %v2083 = vrcp.pop %v1985
        %v2084 = vmul.f32 1.0, %v2083
        %v2085 = vrcp.pop %v1986
        %v2086 = vmul.f32 1.0, %v2085
        %v2087 = vrcp.pop %v1987
        %v2088 = vmul.f32 1.0, %v2087
        %v2089 = vrcp.pop %v1988
        %v2090 = vmul.f32 1.0, %v2089
        %v2091 = vrcp.pop %v1989
        %v2092 = vmul.f32 1.0, %v2091
        %v2093 = vrcp.pop %v1990
        %v2094 = vmul.f32 1.0, %v2093
        %v2095 = vrcp.pop %v1991
        %v2096 = vmul.f32 1.0, %v2095
        %v2097 = vrcp.pop %v1992
        %v2098 = vmul.f32 1.0, %v2097
        %v2099 = vrcp.pop %v1993
        %v2100 = vmul.f32 1.0, %v2099
        %v2101 = vrcp.pop %v1994
        %v2102 = vmul.f32 1.0, %v2101
        %v2103 = vrcp.pop %v1995
        %v2104 = vmul.f32 1.0, %v2103
        %v2105 = vrcp.pop %v1996
        %v2106 = vmul.f32 1.0, %v2105
        %v2107 = vrcp.pop %v1997
        %v2108 = vmul.f32 1.0, %v2107
        %v2109 = vrcp.pop %v1998
        %v2110 = vmul.f32 1.0, %v2109
        %v2111 = vrcp.pop %v1999
        %v2112 = vmul.f32 1.0, %v2111
        %v2113 = vrcp.pop %v2000
        %v2114 = vmul.f32 1.0, %v2113
        %v2115 = vrcp.pop %v2001
        %v2116 = vmul.f32 1.0, %v2115
        %v2117 = vrcp.pop %v2002
        %v2118 = vmul.f32 1.0, %v2117
        %v2119 = vrcp.pop %v2003
        %v2120 = vmul.f32 1.0, %v2119
        %v2121 = vrcp.pop %v2004
        %v2122 = vmul.f32 1.0, %v2121
        %v2123 = vrcp.pop %v2005
        %v2124 = vmul.f32 1.0, %v2123
        %v2125 = vrcp.pop %v2006
        %v2126 = vmul.f32 1.0, %v2125
        %v2127 = vrcp.pop %v2007
        %v2128 = vmul.f32 1.0, %v2127
        %v2129 = vrcp.pop %v2008
        %v2130 = vmul.f32 1.0, %v2129
        %v2131 = vrcp.pop %v2009
        %v2132 = vmul.f32 1.0, %v2131
        %v2133 = vrcp.pop %v2010
        %v2134 = vmul.f32 1.0, %v2133
        %v2135 = vrcp.pop %v2011
        %v2136 = vmul.f32 1.0, %v2135
        %v2137 = vrcp.pop %v2012
        %v2138 = vmul.f32 1.0, %v2137
        %v2139 = vrcp.pop %v2013
        %v2140 = vmul.f32 1.0, %v2139
        %v2141 = vrcp.pop %v2014
        %v2142 = vmul.f32 1.0, %v2141
        %2143 = vst [vmem:[%s340] sm:$0xff] %v2016
        %2144 = vst [vmem:[%s340 + $0x8] sm:$0xff] %v2018
        %2145 = vst [vmem:[%s340 + $0x10] sm:$0xff] %v2020
        %2146 = vst [vmem:[%s340 + $0x18] sm:$0xff] %v2022
        %2147 = vst [vmem:[%s340 + $0x20] sm:$0xff] %v2024
        %2148 = vst [vmem:[%s340 + $0x28] sm:$0xff] %v2026
        %2149 = vst [vmem:[%s340 + $0x30] sm:$0xff] %v2028
        %2150 = vst [vmem:[%s340 + $0x38] sm:$0xff] %v2030
        %2151 = vst [vmem:[%s340 + $0x40] sm:$0xff] %v2032
        %2152 = vst [vmem:[%s340 + $0x48] sm:$0xff] %v2034
        %2153 = vst [vmem:[%s340 + $0x50] sm:$0xff] %v2036
        %2154 = vst [vmem:[%s340 + $0x58] sm:$0xff] %v2038
        %2155 = vst [vmem:[%s340 + $0x60] sm:$0xff] %v2040
        %2156 = vst [vmem:[%s340 + $0x68] sm:$0xff] %v2042
        %2157 = vst [vmem:[%s340 + $0x70] sm:$0xff] %v2044
        %2158 = vst [vmem:[%s340 + $0x78] sm:$0xff] %v2046
        %2159 = vst [vmem:[%s340 + $0x80] sm:$0xff] %v2048
        %2160 = vst [vmem:[%s340 + $0x88] sm:$0xff] %v2050
        %2161 = vst [vmem:[%s340 + $0x90] sm:$0xff] %v2052
        %2162 = vst [vmem:[%s340 + $0x98] sm:$0xff] %v2054
        %2163 = vst [vmem:[%s340 + $0xa0] sm:$0xff] %v2056
        %2164 = vst [vmem:[%s340 + $0xa8] sm:$0xff] %v2058
        %2165 = vst [vmem:[%s340 + $0xb0] sm:$0xff] %v2060
        %2166 = vst [vmem:[%s340 + $0xb8] sm:$0xff] %v2062
        %2167 = vst [vmem:[%s340 + $0xc0] sm:$0xff] %v2064
        %2168 = vst [vmem:[%s340 + $0xc8] sm:$0xff] %v2066
        %2169 = vst [vmem:[%s340 + $0xd0] sm:$0xff] %v2068
        %2170 = vst [vmem:[%s340 + $0xd8] sm:$0xff] %v2070
        %2171 = vst [vmem:[%s340 + $0xe0] sm:$0xff] %v2072
        %2172 = vst [vmem:[%s340 + $0xe8] sm:$0xff] %v2074
        %2173 = vst [vmem:[%s340 + $0xf0] sm:$0xff] %v2076
        %2174 = vst [vmem:[%s340 + $0xf8] sm:$0xff] %v2078
        %2175 = vst [vmem:[%s340 + $0x100] sm:$0xff] %v2080
        %2176 = vst [vmem:[%s340 + $0x108] sm:$0xff] %v2082
        %2177 = vst [vmem:[%s340 + $0x110] sm:$0xff] %v2084
        %2178 = vst [vmem:[%s340 + $0x118] sm:$0xff] %v2086
        %2179 = vst [vmem:[%s340 + $0x120] sm:$0xff] %v2088
        %2180 = vst [vmem:[%s340 + $0x128] sm:$0xff] %v2090
        %2181 = vst [vmem:[%s340 + $0x130] sm:$0xff] %v2092
        %2182 = vst [vmem:[%s340 + $0x138] sm:$0xff] %v2094
        %2183 = vst [vmem:[%s340 + $0x140] sm:$0xff] %v2096
        %2184 = vst [vmem:[%s340 + $0x148] sm:$0xff] %v2098
        %2185 = vst [vmem:[%s340 + $0x150] sm:$0xff] %v2100
        %2186 = vst [vmem:[%s340 + $0x158] sm:$0xff] %v2102
        %2187 = vst [vmem:[%s340 + $0x160] sm:$0xff] %v2104
        %2188 = vst [vmem:[%s340 + $0x168] sm:$0xff] %v2106
        %2189 = vst [vmem:[%s340 + $0x170] sm:$0xff] %v2108
        %2190 = vst [vmem:[%s340 + $0x178] sm:$0xff] %v2110
        %2191 = vst [vmem:[%s340 + $0x180] sm:$0xff] %v2112
        %2192 = vst [vmem:[%s340 + $0x188] sm:$0xff] %v2114
        %2193 = vst [vmem:[%s340 + $0x190] sm:$0xff] %v2116
        %2194 = vst [vmem:[%s340 + $0x198] sm:$0xff] %v2118
        %2195 = vst [vmem:[%s340 + $0x1a0] sm:$0xff] %v2120
        %2196 = vst [vmem:[%s340 + $0x1a8] sm:$0xff] %v2122
        %2197 = vst [vmem:[%s340 + $0x1b0] sm:$0xff] %v2124
        %2198 = vst [vmem:[%s340 + $0x1b8] sm:$0xff] %v2126
        %2199 = vst [vmem:[%s340 + $0x1c0] sm:$0xff] %v2128
        %2200 = vst [vmem:[%s340 + $0x1c8] sm:$0xff] %v2130
        %2201 = vst [vmem:[%s340 + $0x1d0] sm:$0xff] %v2132
        %2202 = vst [vmem:[%s340 + $0x1d8] sm:$0xff] %v2134
        %2203 = vst [vmem:[%s340 + $0x1e0] sm:$0xff] %v2136
        %2204 = vst [vmem:[%s340 + $0x1e8] sm:$0xff] %v2138
        %2205 = vst [vmem:[%s340 + $0x1f0] sm:$0xff] %v2140
        %2206 = vst [vmem:[%s340 + $0x1f8] sm:$0xff] %v2142
        %s2207 = sand.u32 %s186, 1
        %s2208 = scalar_lea.sflag [#allocation4], %s2207
        %s2209 = sand.u32 %s186, 1
        %s2210 = smul.addr %s2209, 512
        %s2211 = scalar_lea.vmem [#allocation10], %s2210
        // Predicated region
        $region65: #{tpu_custom_call.1} parent=47 // pred_check
          %p2212 = pneg %p196
        $region66: #{tpu_custom_call.1} parent=47 // pred_check_branch
          %2214 = sbr.rel (%p2212) target = $region68
        $region67: #{tpu_custom_call.1} parent=47 // pred_region
          %s2215 = smul.u32 64, %s26
          %s2217 = ssub.s32 8192, 8192
          %2218 = vsyncadd %s2208, %s2217
          %s2219 = smul.addr %s2215, 128
          %s2220 = scalar_lea.hbm %s7, %s2219
          %s2221 = sshll.u32 %s2211, 4
          %s2222 = int_to_ptr.vmem [resolvable:$true] %s2221
          %2227 = dma.vmem_to_hbm [thread:$0]  %s2222, 8192, %s2220, %s2208, 128, 128, 8
        $region68: #{tpu_custom_call.1} parent=47 // pred_fallthru
          _
      $region48: #{tpu_custom_call.1} parent=5 // pred_fallthru
        _
      %p2228 = scmp.le.s32.totalorder 2, %s21
      // Predicated region
      $region69: #{tpu_custom_call.1} parent=5 // pred_check
        %p2229 = pneg %p2228
      $region70: #{tpu_custom_call.1} parent=5 // pred_check_branch
        %2231 = sbr.rel (%p2229) target = $region72
      $region71: #{tpu_custom_call.1} parent=5 // pred_region
        %s2232 = ssub.s32 %s21, 2
        // Predicated region
        $region73: #{tpu_custom_call.1} parent=71 // pred_check
          %p2233 = pneg %p202
        $region74: #{tpu_custom_call.1} parent=71 // pred_check_branch
          %2235 = sbr.rel (%p2233) target = $region76
        $region75: #{tpu_custom_call.1} parent=71 // pred_region
          %s2236 = sand.u32 %s187, 1
          %s2237 = scalar_lea.sflag [#allocation4], %s2236
          %s2238 = sand.u32 %s187, 1
          %s2239 = smul.addr %s2238, 512
          %s2240 = scalar_lea.vmem [#allocation10], %s2239
          %2241 = dma.done %s2237, 8192
        $region76: #{tpu_custom_call.1} parent=71 // pred_fallthru
          _
      $region72: #{tpu_custom_call.1} parent=5 // pred_fallthru
        _
    $region6: #{tpu_custom_call.1} parent=1 // loop_footer
      %s25 = sadd.s32 1, %s21
    $region7: #{tpu_custom_call.1} parent=1 // loop_footer_branch
      %20 = sbr.rel target = $region3
    $region8: #{tpu_custom_call.1} parent=1 // loop_exit
      _
    %2242 = vsyncpa [#allocation3], 1
    %s2243 = scalar_lea.sflag [#allocation3], 1
    %2244 = vsyncpa %s2243, 1
    %2245 = vsyncpa [#allocation6], 1
    %2246 = vsyncpa [#allocation9], 1
    %2247 = vsyncpa [#allocation4], 1
    %s2248 = scalar_lea.sflag [#allocation4], 1
    %2249 = vsyncpa %s2248, 1

</llo_original>
